<compile_context>
chip_gen: v5e
topology: v5e:2x2
jax: 0.10.0
libtpu: 0.0.40
codegen_flags: <defaults>
</compile_context>

<pallas_src>
import functools
import math

import jax
import jax.numpy as jnp
from jax.experimental import pallas as pl
from jax.experimental.pallas import tpu as pltpu

_VMEM_LIMIT = 32 * 1024 * 1024


def _layernorm(x, w, b, eps=1e-5):
    mu = jnp.mean(x, axis=-1, keepdims=True)
    var = jnp.mean((x - mu) ** 2, axis=-1, keepdims=True)
    return (x - mu) * jax.lax.rsqrt(var + eps) * w + b


# ----------------------------- kernels --------------------------------------


def qkv_kernel(x_ref, lnw_ref, lnb_ref, wq_ref, bq_ref, wk_ref, bk_ref,
               wv_ref, bv_ref, q_ref, k_ref, v_ref):
    """pre-LN + fused Q/K/V projections over flattened (B*S, D) rows."""
    xn = _layernorm(x_ref[...], lnw_ref[...], lnb_ref[...])
    xb = xn.astype(jnp.bfloat16)              # bf16 matmul operands, f32 accumulation
    q_ref[...] = jnp.dot(xb, wq_ref[...], preferred_element_type=jnp.float32) + bq_ref[...]
    k_ref[...] = jnp.dot(xb, wk_ref[...], preferred_element_type=jnp.float32) + bk_ref[...]
    v_ref[...] = jnp.dot(xb, wv_ref[...], preferred_element_type=jnp.float32) + bv_ref[...]


def attention_kernel(q_ref, k_ref, v_ref, cos_ref, sin_ref, o_ref):
    """RoPE + GQA causal attention for one batch element.

    q: (Hkv, q_per_kv*S, hd) -- the q heads of each KV group are merged into the row
    axis so a single batched contraction feeds the MXU for both scores and PV.
    k/v: (Hkv, S, hd).
    """
    q = q_ref[0]                              # (Hkv, M, hd), M = q_per_kv * S
    k = k_ref[0]                              # (Hkv, S, hd)
    v = v_ref[0]
    S, hd = k.shape[-2], k.shape[-1]

    cos_q = cos_ref[...]                      # (M, hd): rows repeat with period S
    sin_q = sin_ref[...]
    cos_k = cos_q[:S, :]
    sin_k = sin_q[:S, :]

    def rope(t, cos, sin):                    # elementwise rotate_half (matches torch ref)
        h2 = hd // 2
        rot = jnp.concatenate([-t[..., h2:], t[..., :h2]], axis=-1)
        return t * cos + rot * sin

    qr = rope(q, cos_q, sin_q).astype(jnp.bfloat16)
    kr = rope(k, cos_k, sin_k).astype(jnp.bfloat16)

    scale = 1.0 / math.sqrt(hd)
    s = jnp.einsum("gmd,gnd->gmn", qr, kr,
                   preferred_element_type=jnp.float32) * scale       # (Hkv, M, S)

    row = jax.lax.broadcasted_iota(jnp.int32, s.shape, 1) % S        # true query position
    col = jax.lax.broadcasted_iota(jnp.int32, s.shape, 2)
    s = jnp.where(row >= col, s, -1e30)

    s = s - jnp.max(s, axis=-1, keepdims=True)
    p = jnp.exp(s)
    p = p * pl.reciprocal(jnp.sum(p, axis=-1, keepdims=True), approx=True)
    # TODO(synk): nn.Dropout on attention weights is inference-mode identity here.
    o_ref[0] = jnp.einsum("gmn,gnd->gmd", p.astype(jnp.bfloat16),
                          v.astype(jnp.bfloat16),
                          preferred_element_type=jnp.float32)        # (Hkv, M, hd)


def mlp_kernel(x_ref, attn_ref, lnw_ref, lnb_ref, wup_ref, bup_ref, wg_ref, bg_ref,
               wl_ref, bl_ref, beta_ref, wdown_ref, bdown_ref, o_ref):
    """residual + post-LN + up_proj + SwiGLU + down_proj + residual on (B*S, D) rows."""
    x1 = x_ref[...] + attn_ref[...]
    xn = _layernorm(x1, lnw_ref[...], lnb_ref[...]).astype(jnp.bfloat16)
    u = jnp.dot(xn, wup_ref[...], preferred_element_type=jnp.float32) + bup_ref[...]
    ub = u.astype(jnp.bfloat16)
    g = jnp.dot(ub, wg_ref[...], preferred_element_type=jnp.float32) + bg_ref[...]
    lin = jnp.dot(ub, wl_ref[...], preferred_element_type=jnp.float32) + bl_ref[...]
    beta = beta_ref[0, 0]
    sw = g * jax.nn.sigmoid(beta * g) * lin
    d = jnp.dot(sw.astype(jnp.bfloat16), wdown_ref[...],
                preferred_element_type=jnp.float32) + bdown_ref[...]
    o_ref[...] = x1 + d


def out_proj_kernel(x_ref, w_ref, b_ref, o_ref):
    # logits = x @ W + b with W the tied embedding stored once in (D, V) layout.
    o_ref[...] = jnp.dot(x_ref[...].astype(jnp.bfloat16), w_ref[...],
                         preferred_element_type=jnp.float32) + b_ref[...]


# ----------------------------- wrappers -------------------------------------


def run_qkv(xf, layer):
    BS = xf.shape[0]
    dq = layer["wq"].shape[1]
    dkv = layer["wk"].shape[1]
    return pl.pallas_call(
        qkv_kernel,
        out_shape=(jax.ShapeDtypeStruct((BS, dq), jnp.float32),
                   jax.ShapeDtypeStruct((BS, dkv), jnp.float32),
                   jax.ShapeDtypeStruct((BS, dkv), jnp.float32)),
        compiler_params=pltpu.CompilerParams(vmem_limit_bytes=_VMEM_LIMIT),
    )(xf, layer["preln_w"], layer["preln_b"],
      layer["wq"], layer["bq"], layer["wk"], layer["bk"], layer["wv"], layer["bv"])


def run_attention(q, k, v, cos_m, sin_m):
    B, Hkv, M, hd = q.shape
    S = k.shape[2]
    return pl.pallas_call(
        attention_kernel,
        grid=(B,),
        in_specs=[
            pl.BlockSpec((1, Hkv, M, hd), lambda b: (b, 0, 0, 0)),
            pl.BlockSpec((1, Hkv, S, hd), lambda b: (b, 0, 0, 0)),
            pl.BlockSpec((1, Hkv, S, hd), lambda b: (b, 0, 0, 0)),
            pl.BlockSpec((M, hd), lambda b: (0, 0)),
            pl.BlockSpec((M, hd), lambda b: (0, 0)),
        ],
        out_specs=pl.BlockSpec((1, Hkv, M, hd), lambda b: (b, 0, 0, 0)),
        out_shape=jax.ShapeDtypeStruct((B, Hkv, M, hd), jnp.float32),
        compiler_params=pltpu.CompilerParams(
            dimension_semantics=("parallel",),
            vmem_limit_bytes=_VMEM_LIMIT),
    )(q, k, v, cos_m, sin_m)


def run_mlp(xf, attnf, layer):
    BS, D = xf.shape
    return pl.pallas_call(
        mlp_kernel,
        out_shape=jax.ShapeDtypeStruct((BS, D), jnp.float32),
        compiler_params=pltpu.CompilerParams(vmem_limit_bytes=_VMEM_LIMIT),
    )(xf, attnf, layer["postln_w"], layer["postln_b"],
      layer["wup"], layer["bup"], layer["wg"], layer["bg"],
      layer["wl"], layer["bl"], layer["beta"], layer["wdown"], layer["bdown"])


def run_out_proj(xf, w, b):
    BS = xf.shape[0]
    V = w.shape[1]
    return pl.pallas_call(
        out_proj_kernel,
        out_shape=jax.ShapeDtypeStruct((BS, V), jnp.float32),
        compiler_params=pltpu.CompilerParams(vmem_limit_bytes=_VMEM_LIMIT),
    )(xf, w, b)


def run_block(x, layer, cos_m, sin_m, *, num_q_heads, num_kv_heads, head_dim):
    B, S, D = x.shape
    Hq, Hkv, hd = num_q_heads, num_kv_heads, head_dim
    qpk = Hq // Hkv

    xf = x.reshape(B * S, D)
    q, k, v = run_qkv(xf, layer)

    # Wrapper-side layout plumbing (XLA): split heads, group q heads with their KV head.
    q = q.reshape(B, S, Hq, hd).transpose(0, 2, 1, 3).reshape(B, Hkv, qpk * S, hd)
    k = k.reshape(B, S, Hkv, hd).transpose(0, 2, 1, 3)
    v = v.reshape(B, S, Hkv, hd).transpose(0, 2, 1, 3)

    attn = run_attention(q, k, v, cos_m, sin_m)           # (B, Hkv, qpk*S, hd)
    attn = (attn.reshape(B, Hkv, qpk, S, hd)
                .transpose(0, 3, 1, 2, 4)
                .reshape(B * S, D))

    out = run_mlp(xf, attn, layer)                        # both residuals fused here
    return out.reshape(B, S, D)


# ----------------------------- params / forward -----------------------------


def rope_tables(seq_len, head_dim, base=10000.0):
    # Matches RotaryPositionalEmbeddings: repeat_interleave(freqs, 2, -1)
    inv_freq = 1.0 / (base ** (jnp.arange(0, head_dim, 2, dtype=jnp.float32) / head_dim))
    t = jnp.arange(seq_len, dtype=jnp.float32)
    freqs = jnp.einsum("i,j->ij", t, inv_freq)            # (S, head_dim//2)
    emb = jnp.repeat(freqs, 2, axis=-1)                   # (S, head_dim)
    return jnp.cos(emb), jnp.sin(emb)


def init_params(key, vocab, d_model, num_q_heads, num_kv_heads, num_layers,
                proj_fac, head_dim):
    keys = jax.random.split(key, num_layers + 1)
    emb = jax.random.normal(keys[0], (vocab, d_model), jnp.float32) * 0.02
    P = d_model * proj_fac

    def w(kk, shape):
        # weights stored bf16 (MXU operands); biases / LN params stay f32
        return (jax.random.normal(kk, shape, jnp.float32) * 0.02).astype(jnp.bfloat16)

    layers = []
    for l in range(num_layers):
        k = jax.random.split(keys[l + 1], 7)
        layers.append(dict(
            preln_w=jnp.ones((1, d_model), jnp.float32),
            preln_b=jnp.zeros((1, d_model), jnp.float32),
            wq=w(k[0], (d_model, head_dim * num_q_heads)),
            bq=jnp.zeros((1, head_dim * num_q_heads), jnp.float32),
            wk=w(k[1], (d_model, head_dim * num_kv_heads)),
            bk=jnp.zeros((1, head_dim * num_kv_heads), jnp.float32),
            wv=w(k[2], (d_model, head_dim * num_kv_heads)),
            bv=jnp.zeros((1, head_dim * num_kv_heads), jnp.float32),
            postln_w=jnp.ones((1, d_model), jnp.float32),
            postln_b=jnp.zeros((1, d_model), jnp.float32),
            wup=w(k[3], (d_model, P)),
            bup=jnp.zeros((1, P), jnp.float32),
            wg=w(k[4], (P, P)),
            bg=jnp.zeros((1, P), jnp.float32),
            wl=w(k[5], (P, P)),
            bl=jnp.zeros((1, P), jnp.float32),
            beta=jnp.ones((1, 1), jnp.float32),
            wdown=w(k[6], (P, d_model)),
            bdown=jnp.zeros((1, d_model), jnp.float32),
        ))
    # Weight tying: Out_layer.weight = Embedding.weight. Store the (D, V) layout ONCE
    # here so the forward never materializes emb.T.
    out_w = emb.T.astype(jnp.bfloat16)
    out_b = jnp.zeros((1, vocab), jnp.float32)
    return dict(emb=emb, out_w=out_w, out_b=out_b, layers=layers)


def midi_forward(tokens, params, rope, *, num_q_heads, num_kv_heads, head_dim):
    B, S = tokens.shape
    # TODO(synk): embedding gather kept as XLA glue (no clean dense-kernel equivalent).
    x = jnp.take(params["emb"], tokens, axis=0)           # (B, S, D)
    qpk = num_q_heads // num_kv_heads
    cos, sin = rope
    cos_m = jnp.tile(cos, (qpk, 1))                       # (qpk*S, head_dim)
    sin_m = jnp.tile(sin, (qpk, 1))
    for layer in params["layers"]:
        x = run_block(x, layer, cos_m, sin_m,
                      num_q_heads=num_q_heads,
                      num_kv_heads=num_kv_heads,
                      head_dim=head_dim)
    D = x.shape[-1]
    logits = run_out_proj(x.reshape(B * S, D), params["out_w"], params["out_b"])
    return logits.reshape(B, S, -1)


if __name__ == "__main__":
    vocab, seq_len, d_model = 64, 8, 32
    num_q_heads, num_kv_heads = 4, 2
    num_layers, proj_fac = 2, 4
    head_dim = d_model // num_q_heads
    batch = 2

    key = jax.random.PRNGKey(0)
    pk, tk = jax.random.split(key)
    params = init_params(pk, vocab, d_model, num_q_heads, num_kv_heads,
                         num_layers, proj_fac, head_dim)
    rope = rope_tables(seq_len, head_dim)
    tokens = jax.random.randint(tk, (batch, seq_len), 0, vocab, dtype=jnp.int32)

    fwd = jax.jit(functools.partial(midi_forward,
                                    num_q_heads=num_q_heads,
                                    num_kv_heads=num_kv_heads,
                                    head_dim=head_dim))
    logits = fwd(tokens, params, rope)
    jax.block_until_ready(logits)
    assert logits.shape == (batch, seq_len, vocab)
    assert logits.dtype == jnp.float32
    print("KERNEL_OK")
</pallas_src>

<mosaic_0001>
module attributes {stable_mosaic.version = 11 : i64} {
  func.func @qkv_kernel(%arg0: memref<16x32xf32, #tpu.memory_space<vmem>>, %arg1: memref<1x32xf32, #tpu.memory_space<vmem>>, %arg2: memref<1x32xf32, #tpu.memory_space<vmem>>, %arg3: memref<32x32xbf16, #tpu.memory_space<vmem>>, %arg4: memref<1x32xf32, #tpu.memory_space<vmem>>, %arg5: memref<32x16xbf16, #tpu.memory_space<vmem>>, %arg6: memref<1x16xf32, #tpu.memory_space<vmem>>, %arg7: memref<32x16xbf16, #tpu.memory_space<vmem>>, %arg8: memref<1x16xf32, #tpu.memory_space<vmem>>, %arg9: memref<16x32xf32, #tpu.memory_space<vmem>>, %arg10: memref<16x16xf32, #tpu.memory_space<vmem>>, %arg11: memref<16x16xf32, #tpu.memory_space<vmem>>) attributes {dimension_semantics = [], scalar_prefetch = 0 : i64, scratch_operands = 0 : i64, tpu.core_type = #tpu.core_type<tc>} {
    %c0 = arith.constant 0 : index
    %c0_0 = arith.constant 0 : index
    %0 = vector.load %arg0[%c0, %c0_0] : memref<16x32xf32, #tpu.memory_space<vmem>>, vector<16x32xf32>
    %c0_1 = arith.constant 0 : index
    %c0_2 = arith.constant 0 : index
    %1 = vector.load %arg1[%c0_1, %c0_2] : memref<1x32xf32, #tpu.memory_space<vmem>>, vector<1x32xf32>
    %c0_3 = arith.constant 0 : index
    %c0_4 = arith.constant 0 : index
    %2 = vector.load %arg2[%c0_3, %c0_4] : memref<1x32xf32, #tpu.memory_space<vmem>>, vector<1x32xf32>
    %cst = arith.constant dense<0.000000e+00> : vector<16xf32>
    %3 = vector.multi_reduction <add>, %0, %cst [1] : vector<16x32xf32> to vector<16xf32>
    %4 = vector.shape_cast %3 : vector<16xf32> to vector<16x1xf32>
    %cst_5 = arith.constant 3.200000e+01 : f32
    %5 = vector.broadcast %cst_5 : f32 to vector<16x1xf32>
    %6 = arith.divf %4, %5 : vector<16x1xf32>
    %7 = vector.broadcast %6 : vector<16x1xf32> to vector<16x32xf32>
    %8 = arith.subf %0, %7 : vector<16x32xf32>
    %9 = arith.mulf %8, %8 : vector<16x32xf32>
    %cst_6 = arith.constant dense<0.000000e+00> : vector<16xf32>
    %10 = vector.multi_reduction <add>, %9, %cst_6 [1] : vector<16x32xf32> to vector<16xf32>
    %11 = vector.shape_cast %10 : vector<16xf32> to vector<16x1xf32>
    %cst_7 = arith.constant 3.200000e+01 : f32
    %12 = vector.broadcast %cst_7 : f32 to vector<16x1xf32>
    %13 = arith.divf %11, %12 : vector<16x1xf32>
    %14 = vector.broadcast %6 : vector<16x1xf32> to vector<16x32xf32>
    %15 = arith.subf %0, %14 : vector<16x32xf32>
    %cst_8 = arith.constant 9.99999974E-6 : f32
    %16 = vector.broadcast %cst_8 : f32 to vector<16x1xf32>
    %17 = arith.addf %13, %16 : vector<16x1xf32>
    %18 = math.rsqrt %17 : vector<16x1xf32>
    %19 = vector.broadcast %18 : vector<16x1xf32> to vector<16x32xf32>
    %20 = arith.mulf %15, %19 : vector<16x32xf32>
    %21 = vector.broadcast %1 : vector<1x32xf32> to vector<16x32xf32>
    %22 = arith.mulf %20, %21 : vector<16x32xf32>
    %23 = vector.broadcast %2 : vector<1x32xf32> to vector<16x32xf32>
    %24 = arith.addf %22, %23 : vector<16x32xf32>
    %25 = arith.truncf %24 : vector<16x32xf32> to vector<16x32xbf16>
    %c0_9 = arith.constant 0 : index
    %c0_10 = arith.constant 0 : index
    %26 = vector.load %arg3[%c0_9, %c0_10] : memref<32x32xbf16, #tpu.memory_space<vmem>>, vector<32x32xbf16>
    %cst_11 = arith.constant dense<0.000000e+00> : vector<16x32xf32>
    %27 = tpu.matmul %25, %26, %cst_11 {dimension_numbers = #tpu.dot_dimension_numbers<[1], [0], [0], [1], [0, 0, 1, 1], [], []>} : vector<16x32xbf16>, vector<32x32xbf16>, vector<16x32xf32> -> vector<16x32xf32>
    %c0_12 = arith.constant 0 : index
    %c0_13 = arith.constant 0 : index
    %28 = vector.load %arg4[%c0_12, %c0_13] : memref<1x32xf32, #tpu.memory_space<vmem>>, vector<1x32xf32>
    %29 = vector.broadcast %28 : vector<1x32xf32> to vector<16x32xf32>
    %30 = arith.addf %27, %29 : vector<16x32xf32>
    %c0_14 = arith.constant 0 : index
    %c0_15 = arith.constant 0 : index
    %31 = vector.load %arg9[%c0_14, %c0_15] : memref<16x32xf32, #tpu.memory_space<vmem>>, vector<16x32xf32>
    tpu.vector_store %arg9[%c0_14, %c0_15], %30 {strides = array<i32>} : memref<16x32xf32, #tpu.memory_space<vmem>>, vector<16x32xf32>,
    %c0_16 = arith.constant 0 : index
    %c0_17 = arith.constant 0 : index
    %32 = vector.load %arg5[%c0_16, %c0_17] : memref<32x16xbf16, #tpu.memory_space<vmem>>, vector<32x16xbf16>
    %cst_18 = arith.constant dense<0.000000e+00> : vector<16x16xf32>
    %33 = tpu.matmul %25, %32, %cst_18 {dimension_numbers = #tpu.dot_dimension_numbers<[1], [0], [0], [1], [0, 0, 1, 1], [], []>} : vector<16x32xbf16>, vector<32x16xbf16>, vector<16x16xf32> -> vector<16x16xf32>
    %c0_19 = arith.constant 0 : index
    %c0_20 = arith.constant 0 : index
    %34 = vector.load %arg6[%c0_19, %c0_20] : memref<1x16xf32, #tpu.memory_space<vmem>>, vector<1x16xf32>
    %35 = vector.broadcast %34 : vector<1x16xf32> to vector<16x16xf32>
    %36 = arith.addf %33, %35 : vector<16x16xf32>
    %c0_21 = arith.constant 0 : index
    %c0_22 = arith.constant 0 : index
    %37 = vector.load %arg10[%c0_21, %c0_22] : memref<16x16xf32, #tpu.memory_space<vmem>>, vector<16x16xf32>
    tpu.vector_store %arg10[%c0_21, %c0_22], %36 {strides = array<i32>} : memref<16x16xf32, #tpu.memory_space<vmem>>, vector<16x16xf32>,
    %c0_23 = arith.constant 0 : index
    %c0_24 = arith.constant 0 : index
    %38 = vector.load %arg7[%c0_23, %c0_24] : memref<32x16xbf16, #tpu.memory_space<vmem>>, vector<32x16xbf16>
    %cst_25 = arith.constant dense<0.000000e+00> : vector<16x16xf32>
    %39 = tpu.matmul %25, %38, %cst_25 {dimension_numbers = #tpu.dot_dimension_numbers<[1], [0], [0], [1], [0, 0, 1, 1], [], []>} : vector<16x32xbf16>, vector<32x16xbf16>, vector<16x16xf32> -> vector<16x16xf32>
    %c0_26 = arith.constant 0 : index
    %c0_27 = arith.constant 0 : index
    %40 = vector.load %arg8[%c0_26, %c0_27] : memref<1x16xf32, #tpu.memory_space<vmem>>, vector<1x16xf32>
    %41 = vector.broadcast %40 : vector<1x16xf32> to vector<16x16xf32>
    %42 = arith.addf %39, %41 : vector<16x16xf32>
    %c0_28 = arith.constant 0 : index
    %c0_29 = arith.constant 0 : index
    %43 = vector.load %arg11[%c0_28, %c0_29] : memref<16x16xf32, #tpu.memory_space<vmem>>, vector<16x16xf32>
    tpu.vector_store %arg11[%c0_28, %c0_29], %42 {strides = array<i32>} : memref<16x16xf32, #tpu.memory_space<vmem>>, vector<16x16xf32>,
    return
  }
}

module attributes {stable_mosaic.version = 11 : i64} {
  func.func @attention_kernel(%arg0: i32, %arg1: memref<1x2x16x8xf32, #tpu.memory_space<vmem>>, %arg2: memref<1x2x8x8xf32, #tpu.memory_space<vmem>>, %arg3: memref<1x2x8x8xf32, #tpu.memory_space<vmem>>, %arg4: memref<16x8xf32, #tpu.memory_space<vmem>>, %arg5: memref<16x8xf32, #tpu.memory_space<vmem>>, %arg6: memref<1x2x16x8xf32, #tpu.memory_space<vmem>>) attributes {dimension_semantics = [#tpu.dimension_semantics<parallel>], iteration_bounds = array<i64: 2>, scalar_prefetch = 0 : i64, scratch_operands = 0 : i64, tpu.core_type = #tpu.core_type<tc>, window_params = [{transform_indices = @transform_0, window_bounds = array<i64: 1, 2, 16, 8>}, {transform_indices = @transform_1, window_bounds = array<i64: 1, 2, 8, 8>}, {transform_indices = @transform_2, window_bounds = array<i64: 1, 2, 8, 8>}, {pipeline_mode = #tpu.pipeline_mode<synchronous>, transform_indices = @transform_3, window_bounds = array<i64: 16, 8>}, {pipeline_mode = #tpu.pipeline_mode<synchronous>, transform_indices = @transform_4, window_bounds = array<i64: 16, 8>}, {transform_indices = @transform_5, window_bounds = array<i64: 1, 2, 16, 8>}]} {
    %c0 = arith.constant 0 : index
    %c0_0 = arith.constant 0 : index
    %c0_1 = arith.constant 0 : index
    %c0_2 = arith.constant 0 : index
    %0 = vector.load %arg1[%c0, %c0_0, %c0_1, %c0_2] : memref<1x2x16x8xf32, #tpu.memory_space<vmem>>, vector<1x2x16x8xf32>
    %1 = vector.shape_cast %0 : vector<1x2x16x8xf32> to vector<2x16x8xf32>
    %c0_3 = arith.constant 0 : index
    %c0_4 = arith.constant 0 : index
    %c0_5 = arith.constant 0 : index
    %c0_6 = arith.constant 0 : index
    %2 = vector.load %arg2[%c0_3, %c0_4, %c0_5, %c0_6] : memref<1x2x8x8xf32, #tpu.memory_space<vmem>>, vector<1x2x8x8xf32>
    %3 = vector.shape_cast %2 : vector<1x2x8x8xf32> to vector<2x8x8xf32>
    %c0_7 = arith.constant 0 : index
    %c0_8 = arith.constant 0 : index
    %c0_9 = arith.constant 0 : index
    %c0_10 = arith.constant 0 : index
    %4 = vector.load %arg3[%c0_7, %c0_8, %c0_9, %c0_10] : memref<1x2x8x8xf32, #tpu.memory_space<vmem>>, vector<1x2x8x8xf32>
    %5 = vector.shape_cast %4 : vector<1x2x8x8xf32> to vector<2x8x8xf32>
    %c0_11 = arith.constant 0 : index
    %c0_12 = arith.constant 0 : index
    %6 = vector.load %arg4[%c0_11, %c0_12] : memref<16x8xf32, #tpu.memory_space<vmem>>, vector<16x8xf32>
    %c0_13 = arith.constant 0 : index
    %c0_14 = arith.constant 0 : index
    %7 = vector.load %arg5[%c0_13, %c0_14] : memref<16x8xf32, #tpu.memory_space<vmem>>, vector<16x8xf32>
    %8 = vector.extract_strided_slice %6 {offsets = [0, 0], sizes = [8, 8], strides = [1, 1]} : vector<16x8xf32> to vector<8x8xf32>
    %9 = vector.extract_strided_slice %7 {offsets = [0, 0], sizes = [8, 8], strides = [1, 1]} : vector<16x8xf32> to vector<8x8xf32>
    %10 = vector.extract_strided_slice %1 {offsets = [0, 0, 4], sizes = [2, 16, 4], strides = [1, 1, 1]} : vector<2x16x8xf32> to vector<2x16x4xf32>
    %cst = arith.constant 0.000000e+00 : f32
    %11 = vector.broadcast %cst : f32 to vector<2x16x4xf32>
    %12 = arith.subf %11, %10 : vector<2x16x4xf32>
    %13 = vector.extract_strided_slice %1 {offsets = [0, 0, 0], sizes = [2, 16, 4], strides = [1, 1, 1]} : vector<2x16x8xf32> to vector<2x16x4xf32>
    %14 = tpu.concatenate %12, %13 in 2 : vector<2x16x4xf32>, vector<2x16x4xf32> -> vector<2x16x8xf32>
    %15 = vector.shape_cast %6 : vector<16x8xf32> to vector<1x16x8xf32>
    %16 = vector.broadcast %15 : vector<1x16x8xf32> to vector<2x16x8xf32>
    %17 = arith.mulf %1, %16 : vector<2x16x8xf32>
    %18 = vector.shape_cast %7 : vector<16x8xf32> to vector<1x16x8xf32>
    %19 = vector.broadcast %18 : vector<1x16x8xf32> to vector<2x16x8xf32>
    %20 = arith.mulf %14, %19 : vector<2x16x8xf32>
    %21 = arith.addf %17, %20 : vector<2x16x8xf32>
    %22 = arith.truncf %21 : vector<2x16x8xf32> to vector<2x16x8xbf16>
    %23 = vector.extract_strided_slice %3 {offsets = [0, 0, 4], sizes = [2, 8, 4], strides = [1, 1, 1]} : vector<2x8x8xf32> to vector<2x8x4xf32>
    %cst_15 = arith.constant 0.000000e+00 : f32
    %24 = vector.broadcast %cst_15 : f32 to vector<2x8x4xf32>
    %25 = arith.subf %24, %23 : vector<2x8x4xf32>
    %26 = vector.extract_strided_slice %3 {offsets = [0, 0, 0], sizes = [2, 8, 4], strides = [1, 1, 1]} : vector<2x8x8xf32> to vector<2x8x4xf32>
    %27 = tpu.concatenate %25, %26 in 2 : vector<2x8x4xf32>, vector<2x8x4xf32> -> vector<2x8x8xf32>
    %28 = vector.shape_cast %8 : vector<8x8xf32> to vector<1x8x8xf32>
    %29 = vector.broadcast %28 : vector<1x8x8xf32> to vector<2x8x8xf32>
    %30 = arith.mulf %3, %29 : vector<2x8x8xf32>
    %31 = vector.shape_cast %9 : vector<8x8xf32> to vector<1x8x8xf32>
    %32 = vector.broadcast %31 : vector<1x8x8xf32> to vector<2x8x8xf32>
    %33 = arith.mulf %27, %32 : vector<2x8x8xf32>
    %34 = arith.addf %30, %33 : vector<2x8x8xf32>
    %35 = arith.truncf %34 : vector<2x8x8xf32> to vector<2x8x8xbf16>
    "tpu.trace_start"() <{level = 10 : i32, message = "gmd,gnd->gmn"}> : () -> ()
    %cst_16 = arith.constant dense<0.000000e+00> : vector<2x16x8xf32>
    %36 = tpu.matmul %22, %35, %cst_16 {dimension_numbers = #tpu.dot_dimension_numbers<[2], [2], [1], [1], [0, 0, 0, 1, 1, 1], [0], [0]>} : vector<2x16x8xbf16>, vector<2x8x8xbf16>, vector<2x16x8xf32> -> vector<2x16x8xf32>
    "tpu.trace_stop"() : () -> ()
    %cst_17 = arith.constant 0.353553385 : f32
    %37 = vector.broadcast %cst_17 : f32 to vector<2x16x8xf32>
    %38 = arith.mulf %36, %37 : vector<2x16x8xf32>
    %39 = tpu.iota {dimensions = array<i32: 1>} : vector<2x16x8xi32>
    %c8_i32 = arith.constant 8 : i32
    %c0_i32 = arith.constant 0 : i32
    %40 = arith.cmpi eq, %c8_i32, %c0_i32 : i32
    %c1_i32 = arith.constant 1 : i32
    %41 = arith.select %40, %c1_i32, %c8_i32 : i32
    %42 = vector.broadcast %41 : i32 to vector<2x16x8xi32>
    %43 = arith.remsi %39, %42 : vector<2x16x8xi32>
    %c0_i32_18 = arith.constant 0 : i32
    %44 = vector.broadcast %c0_i32_18 : i32 to vector<2x16x8xi32>
    %45 = arith.cmpi ne, %43, %44 : vector<2x16x8xi32>
    %c0_i32_19 = arith.constant 0 : i32
    %46 = vector.broadcast %c0_i32_19 : i32 to vector<2x16x8xi32>
    %47 = arith.cmpi slt, %43, %46 : vector<2x16x8xi32>
    %c0_i32_20 = arith.constant 0 : i32
    %48 = arith.cmpi slt, %41, %c0_i32_20 : i32
    %49 = vector.broadcast %48 : i1 to vector<2x16x8xi1>
    %50 = vector.broadcast %49 : vector<2x16x8xi1> to vector<2x16x8xi1>
    %51 = arith.xori %47, %50 : vector<2x16x8xi1>
    %52 = arith.andi %51, %45 : vector<2x16x8xi1>
    %53 = vector.broadcast %41 : i32 to vector<2x16x8xi32>
    %54 = arith.addi %43, %53 : vector<2x16x8xi32>
    %55 = arith.select %52, %54, %43 : vector<2x16x8xi1>, vector<2x16x8xi32>
    %56 = tpu.iota {dimensions = array<i32: 2>} : vector<2x16x8xi32>
    %57 = arith.cmpi sge, %55, %56 : vector<2x16x8xi32>
    %cst_21 = arith.constant -1.000000e+30 : f32
    %58 = vector.broadcast %cst_21 : f32 to vector<2x16x8xf32>
    %59 = arith.select %57, %38, %58 : vector<2x16x8xi1>, vector<2x16x8xf32>
    %cst_22 = arith.constant dense<0xFF800000> : vector<2x16xf32>
    %60 = vector.multi_reduction <maximumf>, %59, %cst_22 [2] : vector<2x16x8xf32> to vector<2x16xf32>
    %61 = vector.shape_cast %60 : vector<2x16xf32> to vector<2x16x1xf32>
    %62 = vector.broadcast %61 : vector<2x16x1xf32> to vector<2x16x8xf32>
    %63 = arith.subf %59, %62 : vector<2x16x8xf32>
    %64 = math.exp %63 : vector<2x16x8xf32>
    %cst_23 = arith.constant dense<0.000000e+00> : vector<2x16xf32>
    %65 = vector.multi_reduction <add>, %64, %cst_23 [2] : vector<2x16x8xf32> to vector<2x16xf32>
    %66 = vector.shape_cast %65 : vector<2x16xf32> to vector<2x16x1xf32>
    %67 = tpu.reciprocal %66 {approx = true} : vector<2x16x1xf32> -> vector<2x16x1xf32>
    %68 = vector.broadcast %67 : vector<2x16x1xf32> to vector<2x16x8xf32>
    %69 = arith.mulf %64, %68 : vector<2x16x8xf32>
    %70 = arith.truncf %69 : vector<2x16x8xf32> to vector<2x16x8xbf16>
    %71 = arith.truncf %5 : vector<2x8x8xf32> to vector<2x8x8xbf16>
    "tpu.trace_start"() <{level = 10 : i32, message = "gmn,gnd->gmd"}> : () -> ()
    %cst_24 = arith.constant dense<0.000000e+00> : vector<2x16x8xf32>
    %72 = tpu.matmul %70, %71, %cst_24 {dimension_numbers = #tpu.dot_dimension_numbers<[2], [1], [1], [2], [0, 0, 0, 1, 1, 2], [0], [0]>} : vector<2x16x8xbf16>, vector<2x8x8xbf16>, vector<2x16x8xf32> -> vector<2x16x8xf32>
    "tpu.trace_stop"() : () -> ()
    %c0_25 = arith.constant 0 : index
    %c0_26 = arith.constant 0 : index
    %c0_27 = arith.constant 0 : index
    %c0_28 = arith.constant 0 : index
    %73 = vector.load %arg6[%c0_25, %c0_26, %c0_27, %c0_28] : memref<1x2x16x8xf32, #tpu.memory_space<vmem>>, vector<1x2x16x8xf32>
    %74 = vector.shape_cast %73 : vector<1x2x16x8xf32> to vector<2x16x8xf32>
    %75 = vector.shape_cast %72 : vector<2x16x8xf32> to vector<1x2x16x8xf32>
    tpu.vector_store %arg6[%c0_25, %c0_26, %c0_27, %c0_28], %75 {strides = array<i32>} : memref<1x2x16x8xf32, #tpu.memory_space<vmem>>, vector<1x2x16x8xf32>,
    return
  }
  func.func @transform_0(%arg0: i32) -> (i32, i32, i32, i32) {
    %c0_i32 = arith.constant 0 : i32
    %c0_i32_0 = arith.constant 0 : i32
    %c0_i32_1 = arith.constant 0 : i32
    %c0_i32_2 = arith.constant 0 : i32
    return %arg0, %c0_i32, %c0_i32_0, %c0_i32_1 : i32, i32, i32, i32
  }
  func.func @transform_1(%arg0: i32) -> (i32, i32, i32, i32) {
    %c0_i32 = arith.constant 0 : i32
    %c0_i32_0 = arith.constant 0 : i32
    %c0_i32_1 = arith.constant 0 : i32
    %c0_i32_2 = arith.constant 0 : i32
    return %arg0, %c0_i32, %c0_i32_0, %c0_i32_1 : i32, i32, i32, i32
  }
  func.func @transform_2(%arg0: i32) -> (i32, i32, i32, i32) {
    %c0_i32 = arith.constant 0 : i32
    %c0_i32_0 = arith.constant 0 : i32
    %c0_i32_1 = arith.constant 0 : i32
    %c0_i32_2 = arith.constant 0 : i32
    return %arg0, %c0_i32, %c0_i32_0, %c0_i32_1 : i32, i32, i32, i32
  }
  func.func @transform_3(%arg0: i32) -> (i32, i32) {
    %c0_i32 = arith.constant 0 : i32
    %c0_i32_0 = arith.constant 0 : i32
    %c0_i32_1 = arith.constant 0 : i32
    return %c0_i32, %c0_i32_0 : i32, i32
  }
  func.func @transform_4(%arg0: i32) -> (i32, i32) {
    %c0_i32 = arith.constant 0 : i32
    %c0_i32_0 = arith.constant 0 : i32
    %c0_i32_1 = arith.constant 0 : i32
    return %c0_i32, %c0_i32_0 : i32, i32
  }
  func.func @transform_5(%arg0: i32) -> (i32, i32, i32, i32) {
    %c0_i32 = arith.constant 0 : i32
    %c0_i32_0 = arith.constant 0 : i32
    %c0_i32_1 = arith.constant 0 : i32
    %c0_i32_2 = arith.constant 0 : i32
    return %arg0, %c0_i32, %c0_i32_0, %c0_i32_1 : i32, i32, i32, i32
  }
}

module attributes {stable_mosaic.version = 11 : i64} {
  func.func @mlp_kernel(%arg0: memref<16x32xf32, #tpu.memory_space<vmem>>, %arg1: memref<16x32xf32, #tpu.memory_space<vmem>>, %arg2: memref<1x32xf32, #tpu.memory_space<vmem>>, %arg3: memref<1x32xf32, #tpu.memory_space<vmem>>, %arg4: memref<32x128xbf16, #tpu.memory_space<vmem>>, %arg5: memref<1x128xf32, #tpu.memory_space<vmem>>, %arg6: memref<128x128xbf16, #tpu.memory_space<vmem>>, %arg7: memref<1x128xf32, #tpu.memory_space<vmem>>, %arg8: memref<128x128xbf16, #tpu.memory_space<vmem>>, %arg9: memref<1x128xf32, #tpu.memory_space<vmem>>, %arg10: memref<1x1xf32, #tpu.memory_space<vmem>>, %arg11: memref<128x32xbf16, #tpu.memory_space<vmem>>, %arg12: memref<1x32xf32, #tpu.memory_space<vmem>>, %arg13: memref<16x32xf32, #tpu.memory_space<vmem>>) attributes {dimension_semantics = [], scalar_prefetch = 0 : i64, scratch_operands = 0 : i64, tpu.core_type = #tpu.core_type<tc>} {
    %c0 = arith.constant 0 : index
    %c0_0 = arith.constant 0 : index
    %0 = vector.load %arg0[%c0, %c0_0] : memref<16x32xf32, #tpu.memory_space<vmem>>, vector<16x32xf32>
    %c0_1 = arith.constant 0 : index
    %c0_2 = arith.constant 0 : index
    %1 = vector.load %arg1[%c0_1, %c0_2] : memref<16x32xf32, #tpu.memory_space<vmem>>, vector<16x32xf32>
    %2 = arith.addf %0, %1 : vector<16x32xf32>
    %c0_3 = arith.constant 0 : index
    %c0_4 = arith.constant 0 : index
    %3 = vector.load %arg2[%c0_3, %c0_4] : memref<1x32xf32, #tpu.memory_space<vmem>>, vector<1x32xf32>
    %c0_5 = arith.constant 0 : index
    %c0_6 = arith.constant 0 : index
    %4 = vector.load %arg3[%c0_5, %c0_6] : memref<1x32xf32, #tpu.memory_space<vmem>>, vector<1x32xf32>
    %cst = arith.constant dense<0.000000e+00> : vector<16xf32>
    %5 = vector.multi_reduction <add>, %2, %cst [1] : vector<16x32xf32> to vector<16xf32>
    %6 = vector.shape_cast %5 : vector<16xf32> to vector<16x1xf32>
    %cst_7 = arith.constant 3.200000e+01 : f32
    %7 = vector.broadcast %cst_7 : f32 to vector<16x1xf32>
    %8 = arith.divf %6, %7 : vector<16x1xf32>
    %9 = vector.broadcast %8 : vector<16x1xf32> to vector<16x32xf32>
    %10 = arith.subf %2, %9 : vector<16x32xf32>
    %11 = arith.mulf %10, %10 : vector<16x32xf32>
    %cst_8 = arith.constant dense<0.000000e+00> : vector<16xf32>
    %12 = vector.multi_reduction <add>, %11, %cst_8 [1] : vector<16x32xf32> to vector<16xf32>
    %13 = vector.shape_cast %12 : vector<16xf32> to vector<16x1xf32>
    %cst_9 = arith.constant 3.200000e+01 : f32
    %14 = vector.broadcast %cst_9 : f32 to vector<16x1xf32>
    %15 = arith.divf %13, %14 : vector<16x1xf32>
    %16 = vector.broadcast %8 : vector<16x1xf32> to vector<16x32xf32>
    %17 = arith.subf %2, %16 : vector<16x32xf32>
    %cst_10 = arith.constant 9.99999974E-6 : f32
    %18 = vector.broadcast %cst_10 : f32 to vector<16x1xf32>
    %19 = arith.addf %15, %18 : vector<16x1xf32>
    %20 = math.rsqrt %19 : vector<16x1xf32>
    %21 = vector.broadcast %20 : vector<16x1xf32> to vector<16x32xf32>
    %22 = arith.mulf %17, %21 : vector<16x32xf32>
    %23 = vector.broadcast %3 : vector<1x32xf32> to vector<16x32xf32>
    %24 = arith.mulf %22, %23 : vector<16x32xf32>
    %25 = vector.broadcast %4 : vector<1x32xf32> to vector<16x32xf32>
    %26 = arith.addf %24, %25 : vector<16x32xf32>
    %27 = arith.truncf %26 : vector<16x32xf32> to vector<16x32xbf16>
    %c0_11 = arith.constant 0 : index
    %c0_12 = arith.constant 0 : index
    %28 = vector.load %arg4[%c0_11, %c0_12] : memref<32x128xbf16, #tpu.memory_space<vmem>>, vector<32x128xbf16>
    %cst_13 = arith.constant dense<0.000000e+00> : vector<16x128xf32>
    %29 = tpu.matmul %27, %28, %cst_13 {dimension_numbers = #tpu.dot_dimension_numbers<[1], [0], [0], [1], [0, 0, 1, 1], [], []>} : vector<16x32xbf16>, vector<32x128xbf16>, vector<16x128xf32> -> vector<16x128xf32>
    %c0_14 = arith.constant 0 : index
    %c0_15 = arith.constant 0 : index
    %30 = vector.load %arg5[%c0_14, %c0_15] : memref<1x128xf32, #tpu.memory_space<vmem>>, vector<1x128xf32>
    %31 = vector.broadcast %30 : vector<1x128xf32> to vector<16x128xf32>
    %32 = arith.addf %29, %31 : vector<16x128xf32>
    %33 = arith.truncf %32 : vector<16x128xf32> to vector<16x128xbf16>
    %c0_16 = arith.constant 0 : index
    %c0_17 = arith.constant 0 : index
    %34 = vector.load %arg6[%c0_16, %c0_17] : memref<128x128xbf16, #tpu.memory_space<vmem>>, vector<128x128xbf16>
    %cst_18 = arith.constant dense<0.000000e+00> : vector<16x128xf32>
    %35 = tpu.matmul %33, %34, %cst_18 {dimension_numbers = #tpu.dot_dimension_numbers<[1], [0], [0], [1], [0, 0, 1, 1], [], []>} : vector<16x128xbf16>, vector<128x128xbf16>, vector<16x128xf32> -> vector<16x128xf32>
    %c0_19 = arith.constant 0 : index
    %c0_20 = arith.constant 0 : index
    %36 = vector.load %arg7[%c0_19, %c0_20] : memref<1x128xf32, #tpu.memory_space<vmem>>, vector<1x128xf32>
    %37 = vector.broadcast %36 : vector<1x128xf32> to vector<16x128xf32>
    %38 = arith.addf %35, %37 : vector<16x128xf32>
    %c0_21 = arith.constant 0 : index
    %c0_22 = arith.constant 0 : index
    %39 = vector.load %arg8[%c0_21, %c0_22] : memref<128x128xbf16, #tpu.memory_space<vmem>>, vector<128x128xbf16>
    %cst_23 = arith.constant dense<0.000000e+00> : vector<16x128xf32>
    %40 = tpu.matmul %33, %39, %cst_23 {dimension_numbers = #tpu.dot_dimension_numbers<[1], [0], [0], [1], [0, 0, 1, 1], [], []>} : vector<16x128xbf16>, vector<128x128xbf16>, vector<16x128xf32> -> vector<16x128xf32>
    %c0_24 = arith.constant 0 : index
    %c0_25 = arith.constant 0 : index
    %41 = vector.load %arg9[%c0_24, %c0_25] : memref<1x128xf32, #tpu.memory_space<vmem>>, vector<1x128xf32>
    %42 = vector.broadcast %41 : vector<1x128xf32> to vector<16x128xf32>
    %43 = arith.addf %40, %42 : vector<16x128xf32>
    %c0_26 = arith.constant 0 : index
    %c0_27 = arith.constant 0 : index
    %44 = vector.load %arg10[%c0_26, %c0_27] : memref<1x1xf32, #tpu.memory_space<vmem>>, vector<1x1xf32>
    %45 = vector.extract %44[0, 0] : f32 from vector<1x1xf32>
    %46 = vector.broadcast %45 : f32 to vector<16x128xf32>
    %47 = arith.mulf %46, %38 : vector<16x128xf32>
    %48 = arith.negf %47 : vector<16x128xf32>
    %49 = math.exp %48 : vector<16x128xf32>
    %cst_28 = arith.constant 1.000000e+00 : f32
    %50 = vector.broadcast %cst_28 : f32 to vector<16x128xf32>
    %51 = arith.addf %50, %49 : vector<16x128xf32>
    %52 = arith.divf %50, %51 : vector<16x128xf32>
    %53 = arith.mulf %38, %52 : vector<16x128xf32>
    %54 = arith.mulf %53, %43 : vector<16x128xf32>
    %55 = arith.truncf %54 : vector<16x128xf32> to vector<16x128xbf16>
    %c0_29 = arith.constant 0 : index
    %c0_30 = arith.constant 0 : index
    %56 = vector.load %arg11[%c0_29, %c0_30] : memref<128x32xbf16, #tpu.memory_space<vmem>>, vector<128x32xbf16>
    %cst_31 = arith.constant dense<0.000000e+00> : vector<16x32xf32>
    %57 = tpu.matmul %55, %56, %cst_31 {dimension_numbers = #tpu.dot_dimension_numbers<[1], [0], [0], [1], [0, 0, 1, 1], [], []>} : vector<16x128xbf16>, vector<128x32xbf16>, vector<16x32xf32> -> vector<16x32xf32>
    %c0_32 = arith.constant 0 : index
    %c0_33 = arith.constant 0 : index
    %58 = vector.load %arg12[%c0_32, %c0_33] : memref<1x32xf32, #tpu.memory_space<vmem>>, vector<1x32xf32>
    %59 = vector.broadcast %58 : vector<1x32xf32> to vector<16x32xf32>
    %60 = arith.addf %57, %59 : vector<16x32xf32>
    %61 = arith.addf %2, %60 : vector<16x32xf32>
    %c0_34 = arith.constant 0 : index
    %c0_35 = arith.constant 0 : index
    %62 = vector.load %arg13[%c0_34, %c0_35] : memref<16x32xf32, #tpu.memory_space<vmem>>, vector<16x32xf32>
    tpu.vector_store %arg13[%c0_34, %c0_35], %61 {strides = array<i32>} : memref<16x32xf32, #tpu.memory_space<vmem>>, vector<16x32xf32>,
    return
  }
}

module attributes {stable_mosaic.version = 11 : i64} {
  func.func @out_proj_kernel(%arg0: memref<16x32xf32, #tpu.memory_space<vmem>>, %arg1: memref<32x64xbf16, #tpu.memory_space<vmem>>, %arg2: memref<1x64xf32, #tpu.memory_space<vmem>>, %arg3: memref<16x64xf32, #tpu.memory_space<vmem>>) attributes {dimension_semantics = [], scalar_prefetch = 0 : i64, scratch_operands = 0 : i64, tpu.core_type = #tpu.core_type<tc>} {
    %c0 = arith.constant 0 : index
    %c0_0 = arith.constant 0 : index
    %0 = vector.load %arg0[%c0, %c0_0] : memref<16x32xf32, #tpu.memory_space<vmem>>, vector<16x32xf32>
    %1 = arith.truncf %0 : vector<16x32xf32> to vector<16x32xbf16>
    %c0_1 = arith.constant 0 : index
    %c0_2 = arith.constant 0 : index
    %2 = vector.load %arg1[%c0_1, %c0_2] : memref<32x64xbf16, #tpu.memory_space<vmem>>, vector<32x64xbf16>
    %cst = arith.constant dense<0.000000e+00> : vector<16x64xf32>
    %3 = tpu.matmul %1, %2, %cst {dimension_numbers = #tpu.dot_dimension_numbers<[1], [0], [0], [1], [0, 0, 1, 1], [], []>} : vector<16x32xbf16>, vector<32x64xbf16>, vector<16x64xf32> -> vector<16x64xf32>
    %c0_3 = arith.constant 0 : index
    %c0_4 = arith.constant 0 : index
    %4 = vector.load %arg2[%c0_3, %c0_4] : memref<1x64xf32, #tpu.memory_space<vmem>>, vector<1x64xf32>
    %5 = vector.broadcast %4 : vector<1x64xf32> to vector<16x64xf32>
    %6 = arith.addf %3, %5 : vector<16x64xf32>
    %c0_5 = arith.constant 0 : index
    %c0_6 = arith.constant 0 : index
    %7 = vector.load %arg3[%c0_5, %c0_6] : memref<16x64xf32, #tpu.memory_space<vmem>>, vector<16x64xf32>
    tpu.vector_store %arg3[%c0_5, %c0_6], %6 {strides = array<i32>} : memref<16x64xf32, #tpu.memory_space<vmem>>, vector<16x64xf32>,
    return
  }
}

</mosaic_0001>

<llo_original>
// kernel: midi_forward.7
$region0: #{midi_forward.7}
  #allocation0 [shape = 'u32[]', space=smem, size = 0x4, offset = 0x4, fixed_abs, tag = 'smem constant byte address 0x4 - core index']
  #allocation1 [shape = 'u32[72,128]{1,0:T(1,128)}', space=vmem, size = 0x9000, scoped, tag = 'internal scratch']
  %s0 = inlined_call_operand.vmem [shape: f32[16,32], index: 0, kind: input, shape index: {}]
  %s1 = inlined_call_operand.vmem [shape: f32[1,32], index: 1, kind: input, shape index: {}]
  %s2 = inlined_call_operand.vmem [shape: f32[1,32], index: 2, kind: input, shape index: {}]
  %s3 = inlined_call_operand.vmem [shape: bf16[32,32], index: 3, kind: input, shape index: {}]
  %s4 = inlined_call_operand.vmem [shape: f32[1,32], index: 4, kind: input, shape index: {}]
  %s5 = inlined_call_operand.vmem [shape: bf16[32,16], index: 5, kind: input, shape index: {}]
  %s6 = inlined_call_operand.vmem [shape: f32[1,16], index: 6, kind: input, shape index: {}]
  %s7 = inlined_call_operand.vmem [shape: bf16[32,16], index: 7, kind: input, shape index: {}]
  %s8 = inlined_call_operand.vmem [shape: f32[1,16], index: 8, kind: input, shape index: {}]
  %s9 = inlined_call_operand.vmem [shape: f32[16,32], index: 9, kind: output, shape index: {0}]
  %s10 = inlined_call_operand.vmem [shape: f32[16,16], index: 10, kind: output, shape index: {1}]
  %s11 = inlined_call_operand.vmem [shape: f32[16,16], index: 11, kind: output, shape index: {2}]
  %12 = xla_tuple %s9, %s10, %s11
  %s13 = sld [smem:[#allocation0]]
  $region62: #{midi_forward.7} parent=0
    _
  %s15 = ssub.s32 1, %s13
  %s16 = scalar_select 0, %s15, %s13
  // Predicated region
  $region2: #{midi_forward.7} parent=0 // pred_check
    _
  $region3: #{midi_forward.7} parent=0 // pred_check_branch
    %18 = sbr.rel (0) target = $region5
  $region4: #{midi_forward.7} parent=0 // pred_region
    _
  $region5: #{midi_forward.7} parent=0 // pred_fallthru
    _
  // Predicated region
  $region6: #{midi_forward.7} parent=0 // pred_check
    _
  $region7: #{midi_forward.7} parent=0 // pred_check_branch
    %20 = sbr.rel (0) target = $region9
  $region8: #{midi_forward.7} parent=0 // pred_region
    _
  $region9: #{midi_forward.7} parent=0 // pred_fallthru
    _
  // Predicated region
  $region10: #{midi_forward.7} parent=0 // pred_check
    _
  $region11: #{midi_forward.7} parent=0 // pred_check_branch
    %22 = sbr.rel (0) target = $region13
  $region12: #{midi_forward.7} parent=0 // pred_region
    _
  $region13: #{midi_forward.7} parent=0 // pred_fallthru
    _
  // Predicated region
  $region14: #{midi_forward.7} parent=0 // pred_check
    _
  $region15: #{midi_forward.7} parent=0 // pred_check_branch
    %24 = sbr.rel (0) target = $region17
  $region16: #{midi_forward.7} parent=0 // pred_region
    _
  $region17: #{midi_forward.7} parent=0 // pred_fallthru
    _
  // Predicated region
  $region18: #{midi_forward.7} parent=0 // pred_check
    _
  $region19: #{midi_forward.7} parent=0 // pred_check_branch
    %26 = sbr.rel (0) target = $region21
  $region20: #{midi_forward.7} parent=0 // pred_region
    _
  $region21: #{midi_forward.7} parent=0 // pred_fallthru
    _
  // Predicated region
  $region22: #{midi_forward.7} parent=0 // pred_check
    _
  $region23: #{midi_forward.7} parent=0 // pred_check_branch
    %28 = sbr.rel (0) target = $region25
  $region24: #{midi_forward.7} parent=0 // pred_region
    _
  $region25: #{midi_forward.7} parent=0 // pred_fallthru
    _
  // Predicated region
  $region26: #{midi_forward.7} parent=0 // pred_check
    _
  $region27: #{midi_forward.7} parent=0 // pred_check_branch
    %30 = sbr.rel (0) target = $region29
  $region28: #{midi_forward.7} parent=0 // pred_region
    _
  $region29: #{midi_forward.7} parent=0 // pred_fallthru
    _
  // Predicated region
  $region30: #{midi_forward.7} parent=0 // pred_check
    _
  $region31: #{midi_forward.7} parent=0 // pred_check_branch
    %32 = sbr.rel (0) target = $region33
  $region32: #{midi_forward.7} parent=0 // pred_region
    _
  $region33: #{midi_forward.7} parent=0 // pred_fallthru
    _
  // Predicated region
  $region34: #{midi_forward.7} parent=0 // pred_check
    _
  $region35: #{midi_forward.7} parent=0 // pred_check_branch
    %34 = sbr.rel (0) target = $region37
  $region36: #{midi_forward.7} parent=0 // pred_region
    _
  $region37: #{midi_forward.7} parent=0 // pred_fallthru
    _
  %v36 = vld [vmem:[%s0] sm:$0xff]
  %v37 = vld [vmem:[%s0 + $0x8] sm:$0xff]
  %v38 = vld [vmem:[%s1] sm:$0x1]
  %v39 = vld [vmem:[%s2] sm:$0x1]
  %vm40 = vcmask 261120
  %v41 = vsel %vm40, %v36, 0.0
  %42 = vadd.xlane.f32.xlu0 %v41
  %v43 = vpop.xlane.xlu0 %42
  %v44 = vsel %vm40, %v37, 0.0
  %45 = vadd.xlane.f32.xlu0 %v44
  %v46 = vpop.xlane.xlu0 %45
  %v47 = vrcp.pop 32.0
  %v48 = vmul.f32 32.0, %v47
  %v49 = vsub.f32 1.0, %v48
  %v50 = vmul.f32 %v47, %v49
  %v51 = vadd.f32 %v47, %v50
  %vm52 = vweird.f32 %v47
  %v53 = vsel %vm52, %v47, %v51
  %v54 = vmul.f32 %v43, %v53
  %v55 = vmul.f32 %v46, %v53
  %v56 = vsub.f32 %v36, %v54
  %v57 = vsub.f32 %v37, %v55
  %v58 = vmul.f32 %v56, %v56
  %v59 = vmul.f32 %v57, %v57
  %v60 = vsel %vm40, %v58, 0.0
  %61 = vadd.xlane.f32.xlu0 %v60
  %v62 = vpop.xlane.xlu0 %61
  %v63 = vsel %vm40, %v59, 0.0
  %64 = vadd.xlane.f32.xlu0 %v63
  %v65 = vpop.xlane.xlu0 %64
  %v66 = vmul.f32 %v62, %v53
  %v67 = vmul.f32 %v65, %v53
  %v68 = vadd.f32 %v66, 1e-05
  %v69 = vadd.f32 %v67, 1e-05
  %v70 = vrsqrt.pop %v68
  %v71 = vmul.f32 %v70, %v68
  %v72 = vmul.f32 %v71, %v70
  %v73 = vmul.f32 0.5, %v72
  %v74 = vsub.f32 1.5, %v73
  %v75 = vmul.f32 %v70, %v74
  %vm76 = vweird.f32 %v68
  %vm77 = vweird.f32 %v70
  %vm78 = vmor %vm76, %vm77
  %v79 = vsel %vm78, %v70, %v75
  %v80 = vrsqrt.pop %v69
  %v81 = vmul.f32 %v80, %v69
  %v82 = vmul.f32 %v81, %v80
  %v83 = vmul.f32 0.5, %v82
  %v84 = vsub.f32 1.5, %v83
  %v85 = vmul.f32 %v80, %v84
  %vm86 = vweird.f32 %v69
  %vm87 = vweird.f32 %v80
  %vm88 = vmor %vm86, %vm87
  %v89 = vsel %vm88, %v80, %v85
  %v90 = vmul.f32 %v56, %v79
  %v91 = vmul.f32 %v57, %v89
  %v93 = vperm.slane %v38, 0
  %v95 = vmul.f32 %v90, %v93
  %v96 = vmul.f32 %v91, %v93
  %v98 = vperm.slane %v39, 0
  %v100 = vadd.f32 %v95, %v98
  %v101 = vadd.f32 %v96, %v98
  %v102 = vpack.c.bf16 %v101, %v100
  %v103 = vld [vmem:[%s3] sm:$0xf]
  %v104 = vld [vmem:[%s3 + $0x4] sm:$0xf]
  %v105 = vld [vmem:[%s3 + $0x8] sm:$0xf]
  %v106 = vld [vmem:[%s3 + $0xc] sm:$0xf]
  %v107 = vld [vmem:[%s4] sm:$0x1]
  %v109 = vperm.slane %v107, 0
  %v115 = vunpack.c.l.b16 %v103
  %v116 = vunpack.c.l.b16 %v104
  %v117 = vunpack.c.l.b16 %v105
  %v118 = vunpack.c.l.b16 %v106
  %v119 = vpack.c.b16 %v116, %v115
  %v120 = vpack.c.b16 %v118, %v117
  %v124 = vsel %vm40, %v102, 0
  %126 = vmatpush.bf16.msra.mxu0 0
  %127 = vmatpush.bf16.msra.mxu0 0
  %128 = vmatpush.bf16.msra.mxu0 0
  %129 = vmatpush.bf16.msra.mxu0 0
  %130 = vmatpush.bf16.msra.mxu0 0
  %131 = vmatpush.bf16.msra.mxu0 0
  %132 = vmatpush.bf16.msra.mxu0 %v120
  %133 = vmatpush.bf16.msra.mxu0 %v119
  %134 = vmatmul.bf16.gmra.mxu0 %v124
  %v135 = vpop.f32.mrf.mxu0
  %v136 = vadd.f32 %v109, %v135
  %v137 = vpop.f32.mrf.mxu0
  %v138 = vadd.f32 %v109, %v137
  %139 = vdwg.mxu0
  %140 = vst.msk [vmem:[%s9] sm:$0xff] %vm40, %v136
  %141 = vst.msk [vmem:[%s9 + $0x8] sm:$0xff] %vm40, %v138
  %v142 = vld [vmem:[%s5] sm:$0xf]
  %v143 = vld [vmem:[%s5 + $0x4] sm:$0xf]
  %v144 = vld [vmem:[%s5 + $0x8] sm:$0xf]
  %v145 = vld [vmem:[%s5 + $0xc] sm:$0xf]
  %v146 = vld [vmem:[%s6] sm:$0x1]
  %v148 = vperm.slane %v146, 0
  %v154 = vunpack.c.l.b16 %v142
  %v155 = vunpack.c.l.b16 %v143
  %v156 = vunpack.c.l.b16 %v144
  %v157 = vunpack.c.l.b16 %v145
  %v158 = vpack.c.b16 %v155, %v154
  %v159 = vpack.c.b16 %v157, %v156
  %162 = vmatpush.bf16.msra.mxu0 0
  %163 = vmatpush.bf16.msra.mxu0 0
  %164 = vmatpush.bf16.msra.mxu0 0
  %165 = vmatpush.bf16.msra.mxu0 0
  %166 = vmatpush.bf16.msra.mxu0 0
  %167 = vmatpush.bf16.msra.mxu0 0
  %168 = vmatpush.bf16.msra.mxu0 %v159
  %169 = vmatpush.bf16.msra.mxu0 %v158
  %170 = vmatmul.bf16.gmra.mxu0 %v124
  %v171 = vpop.f32.mrf.mxu0
  %v172 = vadd.f32 %v148, %v171
  %v173 = vpop.f32.mrf.mxu0
  %v174 = vadd.f32 %v148, %v173
  %175 = vdwg.mxu0
  %vm176 = vcmask 130048
  %177 = vst.msk [vmem:[%s10] sm:$0xff] %vm176, %v172
  %178 = vst.msk [vmem:[%s10 + $0x8] sm:$0xff] %vm176, %v174
  %v179 = vld [vmem:[%s7] sm:$0xf]
  %v180 = vld [vmem:[%s7 + $0x4] sm:$0xf]
  %v181 = vld [vmem:[%s7 + $0x8] sm:$0xf]
  %v182 = vld [vmem:[%s7 + $0xc] sm:$0xf]
  %v183 = vld [vmem:[%s8] sm:$0x1]
  %v185 = vperm.slane %v183, 0
  %v191 = vunpack.c.l.b16 %v179
  %v192 = vunpack.c.l.b16 %v180
  %v193 = vunpack.c.l.b16 %v181
  %v194 = vunpack.c.l.b16 %v182
  %v195 = vpack.c.b16 %v192, %v191
  %v196 = vpack.c.b16 %v194, %v193
  %199 = vmatpush.bf16.msra.mxu0 0
  %200 = vmatpush.bf16.msra.mxu0 0
  %201 = vmatpush.bf16.msra.mxu0 0
  %202 = vmatpush.bf16.msra.mxu0 0
  %203 = vmatpush.bf16.msra.mxu0 0
  %204 = vmatpush.bf16.msra.mxu0 0
  %205 = vmatpush.bf16.msra.mxu0 %v196
  %206 = vmatpush.bf16.msra.mxu0 %v195
  %207 = vmatmul.bf16.gmra.mxu0 %v124
  %v208 = vpop.f32.mrf.mxu0
  %v209 = vadd.f32 %v185, %v208
  %v210 = vpop.f32.mrf.mxu0
  %v211 = vadd.f32 %v185, %v210
  %212 = vdwg.mxu0
  %213 = vst.msk [vmem:[%s11] sm:$0xff] %vm176, %v209
  %214 = vst.msk [vmem:[%s11 + $0x8] sm:$0xff] %vm176, %v211
  // Predicated region
  $region38: #{midi_forward.7} parent=0 // pred_check
    _
  $region39: #{midi_forward.7} parent=0 // pred_check_branch
    %216 = sbr.rel (0) target = $region41
  $region40: #{midi_forward.7} parent=0 // pred_region
    _
  $region41: #{midi_forward.7} parent=0 // pred_fallthru
    _
  // Predicated region
  $region42: #{midi_forward.7} parent=0 // pred_check
    _
  $region43: #{midi_forward.7} parent=0 // pred_check_branch
    %218 = sbr.rel (0) target = $region45
  $region44: #{midi_forward.7} parent=0 // pred_region
    _
  $region45: #{midi_forward.7} parent=0 // pred_fallthru
    _
  // Predicated region
  $region46: #{midi_forward.7} parent=0 // pred_check
    _
  $region47: #{midi_forward.7} parent=0 // pred_check_branch
    %220 = sbr.rel (0) target = $region49
  $region48: #{midi_forward.7} parent=0 // pred_region
    _
  $region49: #{midi_forward.7} parent=0 // pred_fallthru
    _
  // Predicated region
  $region50: #{midi_forward.7} parent=0 // pred_check
    _
  $region51: #{midi_forward.7} parent=0 // pred_check_branch
    %222 = sbr.rel (0) target = $region53
  $region52: #{midi_forward.7} parent=0 // pred_region
    _
  $region53: #{midi_forward.7} parent=0 // pred_fallthru
    _
  // Predicated region
  $region54: #{midi_forward.7} parent=0 // pred_check
    _
  $region55: #{midi_forward.7} parent=0 // pred_check_branch
    %224 = sbr.rel (0) target = $region57
  $region56: #{midi_forward.7} parent=0 // pred_region
    _
  $region57: #{midi_forward.7} parent=0 // pred_fallthru
    _
  // Predicated region
  $region58: #{midi_forward.7} parent=0 // pred_check
    _
  $region59: #{midi_forward.7} parent=0 // pred_check_branch
    %226 = sbr.rel (0) target = $region61
  $region60: #{midi_forward.7} parent=0 // pred_region
    _
  $region61: #{midi_forward.7} parent=0 // pred_fallthru
    _

// kernel: midi_forward.8
$region0: #{midi_forward.8}
  #allocation0 [shape = 'u32[]', space=smem, size = 0x4, offset = 0x4, fixed_abs, tag = 'smem constant byte address 0x4 - core index']
  #allocation1 [shape = 'u32[72,128]{1,0:T(1,128)}', space=vmem, size = 0x9000, scoped, tag = 'internal scratch']
  %s0 = inlined_call_operand.vmem [shape: f32[2,2,16,8], index: 0, kind: input, shape index: {}]
  %s1 = inlined_call_operand.vmem [shape: f32[2,2,8,8], index: 1, kind: input, shape index: {}]
  %s2 = inlined_call_operand.vmem [shape: f32[2,2,8,8], index: 2, kind: input, shape index: {}]
  %s3 = inlined_call_operand.vmem [shape: f32[16,8], index: 3, kind: input, shape index: {}]
  %s4 = inlined_call_operand.vmem [shape: f32[16,8], index: 4, kind: input, shape index: {}]
  %s5 = inlined_call_operand.vmem [shape: f32[2,2,16,8], index: 5, kind: output, shape index: {}]
  %s6 = sld [smem:[#allocation0]]
  $region53: #{midi_forward.8} parent=0
    _
  %s8 = ssub.s32 1, %s6
  %s9 = scalar_select 0, %s8, %s6
  loop: start=0, step=1, limit=4
  $region2: #{midi_forward.8} parent=0 // loop_pre_header
    _
  $region3: #{midi_forward.8} parent=0 // loop_header
    %s11 = sphi 0, %s15
    %p12 = scmp.ge.s32.totalorder %s11, 4
    %s21 = sphi 0, %s23
    %s24 = sphi 0, %s21
    %s25 = sphi 0, %s24
    %s41 = sphi 0, %s25
    %s47 = sphi 0, %s49
    %s50 = sphi 0, %s47
    %s51 = sphi 0, %s50
    %s67 = sphi 0, %s51
    %s73 = sphi 0, %s75
    %s76 = sphi 0, %s73
    %s77 = sphi 0, %s76
    %s93 = sphi 0, %s77
    %s97 = sphi 0, %s97
    %s99 = sphi 0, %s97
    %s100 = sphi 0, %s99
    %s114 = sphi 0, %s100
    %s118 = sphi 0, %s118
    %s120 = sphi 0, %s118
    %s121 = sphi 0, %s120
    %s135 = sphi 0, %s121
    %s141 = sphi 0, %s143
    %s144 = sphi 0, %s141
    %s145 = sphi 0, %s144
    %s161 = sphi 0, %s145
  $region4: #{midi_forward.8} parent=0 // loop_header_branch
    %14 = sbr.rel (%p12) target = $region8
  $region5: #{midi_forward.8} parent=0 // loop_body
    %s16 = ssub.s32 %s11, 1
    %s17 = ssub.s32 %s11, 2
    %s18 = sadd.s32 %s11, 1
    %s19 = ssub.s32 %s11, %s18
    %p20 = scmp.eq.s32.totalorder %s19, 0
    %s22 = sadd.s32 %s21, 1
    %s23 = scalar_select %p20, %s21, %s22
    %p26 = pneg %p20
    %p27 = scmp.eq.s32.totalorder %s11, 1
    %p28 = por %p26, %p27
    %p29 = scmp.ne.s32.totalorder %s21, %s24
    %p30 = scmp.eq.s32.totalorder %s11, 0
    %p31 = por %p29, %p30
    %p32 = scmp.ne.s32.totalorder %s21, %s24
    %p33 = scmp.eq.s32.totalorder %s16, 1
    %p34 = por %p32, %p33
    %p35 = scmp.ne.s32.totalorder %s24, %s25
    %p36 = scmp.eq.s32.totalorder %s16, 0
    %p37 = por %p35, %p36
    %p38 = scmp.ne.s32.totalorder %s24, %s25
    %p39 = scmp.eq.s32.totalorder %s17, 1
    %p40 = por %p38, %p39
    %p42 = scmp.ne.s32.totalorder %s25, %s41
    %p43 = scmp.eq.s32.totalorder %s17, 0
    %p44 = por %p42, %p43
    %s45 = ssub.s32 %s11, %s18
    %p46 = scmp.eq.s32.totalorder %s45, 0
    %s48 = sadd.s32 %s47, 1
    %s49 = scalar_select %p46, %s47, %s48
    %p52 = pneg %p46
    %p53 = scmp.eq.s32.totalorder %s11, 1
    %p54 = por %p52, %p53
    %p55 = scmp.ne.s32.totalorder %s47, %s50
    %p56 = scmp.eq.s32.totalorder %s11, 0
    %p57 = por %p55, %p56
    %p58 = scmp.ne.s32.totalorder %s47, %s50
    %p59 = scmp.eq.s32.totalorder %s16, 1
    %p60 = por %p58, %p59
    %p61 = scmp.ne.s32.totalorder %s50, %s51
    %p62 = scmp.eq.s32.totalorder %s16, 0
    %p63 = por %p61, %p62
    %p64 = scmp.ne.s32.totalorder %s50, %s51
    %p65 = scmp.eq.s32.totalorder %s17, 1
    %p66 = por %p64, %p65
    %p68 = scmp.ne.s32.totalorder %s51, %s67
    %p69 = scmp.eq.s32.totalorder %s17, 0
    %p70 = por %p68, %p69
    %s71 = ssub.s32 %s11, %s18
    %p72 = scmp.eq.s32.totalorder %s71, 0
    %s74 = sadd.s32 %s73, 1
    %s75 = scalar_select %p72, %s73, %s74
    %p78 = pneg %p72
    %p79 = scmp.eq.s32.totalorder %s11, 1
    %p80 = por %p78, %p79
    %p81 = scmp.ne.s32.totalorder %s73, %s76
    %p82 = scmp.eq.s32.totalorder %s11, 0
    %p83 = por %p81, %p82
    %p84 = scmp.ne.s32.totalorder %s73, %s76
    %p85 = scmp.eq.s32.totalorder %s16, 1
    %p86 = por %p84, %p85
    %p87 = scmp.ne.s32.totalorder %s76, %s77
    %p88 = scmp.eq.s32.totalorder %s16, 0
    %p89 = por %p87, %p88
    %p90 = scmp.ne.s32.totalorder %s76, %s77
    %p91 = scmp.eq.s32.totalorder %s17, 1
    %p92 = por %p90, %p91
    %p94 = scmp.ne.s32.totalorder %s77, %s93
    %p95 = scmp.eq.s32.totalorder %s17, 0
    %p96 = por %p94, %p95
    %s98 = sadd.s32 %s97, 1
    %p101 = scmp.eq.s32.totalorder %s11, 1
    %p102 = scmp.ne.s32.totalorder %s97, %s99
    %p103 = scmp.eq.s32.totalorder %s11, 0
    %p104 = por %p102, %p103
    %p105 = scmp.ne.s32.totalorder %s97, %s99
    %p106 = scmp.eq.s32.totalorder %s16, 1
    %p107 = por %p105, %p106
    %p108 = scmp.ne.s32.totalorder %s99, %s100
    %p109 = scmp.eq.s32.totalorder %s16, 0
    %p110 = por %p108, %p109
    %p111 = scmp.ne.s32.totalorder %s99, %s100
    %p112 = scmp.eq.s32.totalorder %s17, 1
    %p113 = por %p111, %p112
    %p115 = scmp.ne.s32.totalorder %s100, %s114
    %p116 = scmp.eq.s32.totalorder %s17, 0
    %p117 = por %p115, %p116
    %s119 = sadd.s32 %s118, 1
    %p122 = scmp.eq.s32.totalorder %s11, 1
    %p123 = scmp.ne.s32.totalorder %s118, %s120
    %p124 = scmp.eq.s32.totalorder %s11, 0
    %p125 = por %p123, %p124
    %p126 = scmp.ne.s32.totalorder %s118, %s120
    %p127 = scmp.eq.s32.totalorder %s16, 1
    %p128 = por %p126, %p127
    %p129 = scmp.ne.s32.totalorder %s120, %s121
    %p130 = scmp.eq.s32.totalorder %s16, 0
    %p131 = por %p129, %p130
    %p132 = scmp.ne.s32.totalorder %s120, %s121
    %p133 = scmp.eq.s32.totalorder %s17, 1
    %p134 = por %p132, %p133
    %p136 = scmp.ne.s32.totalorder %s121, %s135
    %p137 = scmp.eq.s32.totalorder %s17, 0
    %p138 = por %p136, %p137
    %s139 = ssub.s32 %s11, %s18
    %p140 = scmp.eq.s32.totalorder %s139, 0
    %s142 = sadd.s32 %s141, 1
    %s143 = scalar_select %p140, %s141, %s142
    %p146 = pneg %p140
    %p147 = scmp.eq.s32.totalorder %s11, 1
    %p148 = por %p146, %p147
    %p149 = scmp.ne.s32.totalorder %s141, %s144
    %p150 = scmp.eq.s32.totalorder %s11, 0
    %p151 = por %p149, %p150
    %p152 = scmp.ne.s32.totalorder %s141, %s144
    %p153 = scmp.eq.s32.totalorder %s16, 1
    %p154 = por %p152, %p153
    %p155 = scmp.ne.s32.totalorder %s144, %s145
    %p156 = scmp.eq.s32.totalorder %s16, 0
    %p157 = por %p155, %p156
    %p158 = scmp.ne.s32.totalorder %s144, %s145
    %p159 = scmp.eq.s32.totalorder %s17, 1
    %p160 = por %p158, %p159
    %p162 = scmp.ne.s32.totalorder %s145, %s161
    %p163 = scmp.eq.s32.totalorder %s17, 0
    %p164 = por %p162, %p163
    %p165 = scmp.le.s32.totalorder 1, %s11
    %p166 = scmp.lt.s32.totalorder %s11, 3
    %p167 = pnand %p165, %p166
    %p168 = pneg %p167
    // Predicated region
    $region9: #{midi_forward.8} parent=5 // pred_check
      _
    $region10: #{midi_forward.8} parent=5 // pred_check_branch
      %170 = sbr.rel (%p167) target = $region12
    $region11: #{midi_forward.8} parent=5 // pred_region
      %s171 = ssub.s32 %s11, 1
      // Predicated region
      $region13: #{midi_forward.8} parent=11 // pred_check
        %p172 = pneg %p110
      $region14: #{midi_forward.8} parent=11 // pred_check_branch
        %174 = sbr.rel (%p172) target = $region16
      $region15: #{midi_forward.8} parent=11 // pred_region
        _
      $region16: #{midi_forward.8} parent=11 // pred_fallthru
        _
      // Predicated region
      $region17: #{midi_forward.8} parent=11 // pred_check
        %p175 = pneg %p131
      $region18: #{midi_forward.8} parent=11 // pred_check_branch
        %177 = sbr.rel (%p175) target = $region20
      $region19: #{midi_forward.8} parent=11 // pred_region
        _
      $region20: #{midi_forward.8} parent=11 // pred_fallthru
        _
    $region12: #{midi_forward.8} parent=5 // pred_fallthru
      _
    %p178 = scmp.lt.s32.totalorder %s11, 2
    // Predicated region
    $region21: #{midi_forward.8} parent=5 // pred_check
      %p179 = pneg %p178
    $region22: #{midi_forward.8} parent=5 // pred_check_branch
      %181 = sbr.rel (%p179) target = $region24
    $region23: #{midi_forward.8} parent=5 // pred_region
      // Predicated region
      $region25: #{midi_forward.8} parent=23 // pred_check
        %p182 = pneg %p31
      $region26: #{midi_forward.8} parent=23 // pred_check_branch
        %184 = sbr.rel (%p182) target = $region28
      $region27: #{midi_forward.8} parent=23 // pred_region
        %p185 = scmp.lt.s32.totalorder %s11, 1
        %s186 = scalar_select %p185, %s11, 1
        %s187 = smul.addr %s186, 4
        %s188 = smul.addr %s187, 8
        %s189 = scalar_lea.vmem %s0, %s188
      $region28: #{midi_forward.8} parent=23 // pred_fallthru
        _
      // Predicated region
      $region29: #{midi_forward.8} parent=23 // pred_check
        %p190 = pneg %p57
      $region30: #{midi_forward.8} parent=23 // pred_check_branch
        %192 = sbr.rel (%p190) target = $region32
      $region31: #{midi_forward.8} parent=23 // pred_region
        %p193 = scmp.lt.s32.totalorder %s11, 1
        %s194 = scalar_select %p193, %s11, 1
        %s195 = smul.addr %s194, 2
        %s196 = smul.addr %s195, 8
        %s197 = scalar_lea.vmem %s1, %s196
      $region32: #{midi_forward.8} parent=23 // pred_fallthru
        _
      // Predicated region
      $region33: #{midi_forward.8} parent=23 // pred_check
        %p198 = pneg %p83
      $region34: #{midi_forward.8} parent=23 // pred_check_branch
        %200 = sbr.rel (%p198) target = $region36
      $region35: #{midi_forward.8} parent=23 // pred_region
        %p201 = scmp.lt.s32.totalorder %s11, 1
        %s202 = scalar_select %p201, %s11, 1
        %s203 = smul.addr %s202, 2
        %s204 = smul.addr %s203, 8
        %s205 = scalar_lea.vmem %s2, %s204
      $region36: #{midi_forward.8} parent=23 // pred_fallthru
        _
    $region24: #{midi_forward.8} parent=5 // pred_fallthru
      _
    %p206 = scmp.le.s32.totalorder 1, %s11
    %p207 = scmp.lt.s32.totalorder %s11, 3
    %p208 = pnand %p206, %p207
    %p209 = pneg %p208
    // Predicated region
    $region37: #{midi_forward.8} parent=5 // pred_check
      _
    $region38: #{midi_forward.8} parent=5 // pred_check_branch
      %211 = sbr.rel (%p208) target = $region40
    $region39: #{midi_forward.8} parent=5 // pred_region
      %s212 = ssub.s32 %s11, 1
      %p213 = scmp.lt.s32.totalorder %s16, 1
      %s214 = scalar_select %p213, %s16, 1
      %s215 = smul.addr %s214, 4
      %s216 = smul.addr %s215, 8
      %s217 = scalar_lea.vmem %s0, %s216
      %p218 = pneg %p37
      %p219 = pneg %p34
      %p220 = scmp.lt.s32.totalorder %s16, 1
      %s221 = scalar_select %p220, %s16, 1
      %s222 = smul.addr %s221, 2
      %s223 = smul.addr %s222, 8
      %s224 = scalar_lea.vmem %s1, %s223
      %p225 = pneg %p63
      %p226 = pneg %p60
      %p227 = scmp.lt.s32.totalorder %s16, 1
      %s228 = scalar_select %p227, %s16, 1
      %s229 = smul.addr %s228, 2
      %s230 = smul.addr %s229, 8
      %s231 = scalar_lea.vmem %s2, %s230
      %p232 = pneg %p89
      %p233 = pneg %p86
      %p234 = pneg %p110
      %p235 = pneg %p107
      %p236 = pneg %p131
      %p237 = pneg %p128
      %p238 = pneg %p157
      %p239 = pneg %p154
      %p240 = scmp.lt.s32.totalorder %s16, 1
      %s241 = scalar_select %p240, %s16, 1
      %s242 = smul.addr %s241, 4
      %s243 = smul.addr %s242, 8
      %s244 = scalar_lea.vmem %s5, %s243
      %p245 = scmp.lt.s32.totalorder %s16, 1
      %s246 = scalar_select %p245, %s16, 1
      %s247 = smul.addr %s246, 4
      %s248 = smul.addr %s247, 8
      %s249 = scalar_lea.vmem %s0, %s248
      %p250 = scmp.lt.s32.totalorder %s16, 1
      %s251 = scalar_select %p250, %s16, 1
      %s252 = smul.addr %s251, 2
      %s253 = smul.addr %s252, 8
      %s254 = scalar_lea.vmem %s1, %s253
      %p255 = scmp.lt.s32.totalorder %s16, 1
      %s256 = scalar_select %p255, %s16, 1
      %s257 = smul.addr %s256, 2
      %s258 = smul.addr %s257, 8
      %s259 = scalar_lea.vmem %s2, %s258
      %p260 = scmp.lt.s32.totalorder %s16, 1
      %s261 = scalar_select %p260, %s16, 1
      %s262 = smul.addr %s261, 4
      %s263 = smul.addr %s262, 8
      %s264 = scalar_lea.vmem %s5, %s263
      %v266 = vld [vmem:[%s249] sm:$0xff]
      %v267 = vld [vmem:[%s249 + $0x8] sm:$0xff]
      %v268 = vld [vmem:[%s249 + $0x10] sm:$0xff]
      %v269 = vld [vmem:[%s249 + $0x18] sm:$0xff]
      %v270 = vld [vmem:[%s254] sm:$0xff]
      %v271 = vld [vmem:[%s254 + $0x8] sm:$0xff]
      %v272 = vld [vmem:[%s259] sm:$0xff]
      %v273 = vld [vmem:[%s259 + $0x8] sm:$0xff]
      %v274 = vld [vmem:[%s3] sm:$0xff]
      %v275 = vld [vmem:[%s3 + $0x8] sm:$0xff]
      %v276 = vld [vmem:[%s4] sm:$0xff]
      %v277 = vld [vmem:[%s4 + $0x8] sm:$0xff]
      %v278 = vsub.f32 0.0, %v266
      %v279 = vsub.f32 0.0, %v267
      %v280 = vsub.f32 0.0, %v268
      %v281 = vsub.f32 0.0, %v269
      %286 = vrot.lane.b32.xlu0 %v278, 124
      %v287 = vpop.permute.xlu0 %286
      %288 = vrot.lane.b32.xlu0 %v279, 124
      %v289 = vpop.permute.xlu0 %288
      %290 = vrot.lane.b32.xlu0 %v280, 124
      %v291 = vpop.permute.xlu0 %290
      %292 = vrot.lane.b32.xlu0 %v281, 124
      %v293 = vpop.permute.xlu0 %292
      %302 = vrot.lane.b32.xlu0 %v266, 4
      %v303 = vpop.permute.xlu0 %302
      %304 = vrot.lane.b32.xlu0 %v267, 4
      %v305 = vpop.permute.xlu0 %304
      %306 = vrot.lane.b32.xlu0 %v268, 4
      %v307 = vpop.permute.xlu0 %306
      %308 = vrot.lane.b32.xlu0 %v269, 4
      %v309 = vpop.permute.xlu0 %308
      %vm314 = vcmask 31744
      %v315 = vsel %vm314, %v287, %v303
      %v316 = vsel %vm314, %v289, %v305
      %v317 = vsel %vm314, %v291, %v307
      %v318 = vsel %vm314, %v293, %v309
      %v319 = vmul.f32 %v266, %v274
      %v320 = vmul.f32 %v267, %v275
      %v321 = vmul.f32 %v268, %v274
      %v322 = vmul.f32 %v269, %v275
      %v323 = vmul.f32 %v315, %v276
      %v324 = vmul.f32 %v316, %v277
      %v325 = vmul.f32 %v317, %v276
      %v326 = vmul.f32 %v318, %v277
      %v327 = vadd.f32 %v319, %v323
      %v328 = vadd.f32 %v320, %v324
      %v329 = vadd.f32 %v321, %v325
      %v330 = vadd.f32 %v322, %v326
      %v331 = vpack.c.bf16 %v327, %v327
      %v332 = vpack.c.bf16 %v328, %v328
      %v333 = vpack.c.bf16 %v329, %v329
      %v334 = vpack.c.bf16 %v330, %v330
      %v335 = vsub.f32 0.0, %v270
      %v336 = vsub.f32 0.0, %v271
      %339 = vrot.lane.b32.xlu0 %v335, 124
      %v340 = vpop.permute.xlu0 %339
      %341 = vrot.lane.b32.xlu0 %v336, 124
      %v342 = vpop.permute.xlu0 %341
      %347 = vrot.lane.b32.xlu0 %v270, 4
      %v348 = vpop.permute.xlu0 %347
      %349 = vrot.lane.b32.xlu0 %v271, 4
      %v350 = vpop.permute.xlu0 %349
      %v353 = vsel %vm314, %v340, %v348
      %v354 = vsel %vm314, %v342, %v350
      %v355 = vmul.f32 %v270, %v274
      %v356 = vmul.f32 %v271, %v274
      %v357 = vmul.f32 %v353, %v276
      %v358 = vmul.f32 %v354, %v276
      %v359 = vadd.f32 %v355, %v357
      %v360 = vadd.f32 %v356, %v358
      %v361 = vpack.c.bf16 %v359, %v359
      %v362 = vpack.c.bf16 %v360, %v360
      %v365 = vunpack.c.l.b16 %v331
      %v366 = vunpack.c.l.b16 %v332
      %v367 = vpack.c.b16 %v366, %v365
      %vm368 = vcmask 64512
      %v370 = vsel %vm368, %v367, 0
      %v373 = vsel %vm368, %v361, 0
      %375 = vmatpush.bf16.xpose.msra.mxu0 0
      %376 = vmatpush.bf16.xpose.msra.mxu0 0
      %377 = vmatpush.bf16.xpose.msra.mxu0 0
      %378 = vmatpush.bf16.xpose.msra.mxu0 0
      %379 = vmatpush.bf16.xpose.msra.mxu0 0
      %380 = vmatpush.bf16.xpose.msra.mxu0 0
      %381 = vmatpush.bf16.xpose.msra.mxu0 0
      %382 = vmatpush.bf16.xpose.msra.mxu0 %v373
      %383 = vmatmul.bf16.gmra.mxu0 %v370
      %v384 = vpop.f32.mrf.mxu0
      %v385 = vadd.f32 0.0, %v384
      %v386 = vpop.f32.mrf.mxu0
      %v387 = vadd.f32 0.0, %v386
      %388 = vdwg.mxu0
      %v391 = vunpack.c.l.b16 %v333
      %v392 = vunpack.c.l.b16 %v334
      %v393 = vpack.c.b16 %v392, %v391
      %v395 = vsel %vm368, %v393, 0
      %v398 = vsel %vm368, %v362, 0
      %400 = vmatpush.bf16.xpose.msra.mxu0 0
      %401 = vmatpush.bf16.xpose.msra.mxu0 0
      %402 = vmatpush.bf16.xpose.msra.mxu0 0
      %403 = vmatpush.bf16.xpose.msra.mxu0 0
      %404 = vmatpush.bf16.xpose.msra.mxu0 0
      %405 = vmatpush.bf16.xpose.msra.mxu0 0
      %406 = vmatpush.bf16.xpose.msra.mxu0 0
      %407 = vmatpush.bf16.xpose.msra.mxu0 %v398
      %408 = vmatmul.bf16.gmra.mxu0 %v395
      %v409 = vpop.f32.mrf.mxu0
      %v410 = vadd.f32 0.0, %v409
      %v411 = vpop.f32.mrf.mxu0
      %v412 = vadd.f32 0.0, %v411
      %413 = vdwg.mxu0
      %v414 = vmul.f32 %v385, 0.35355338
      %v415 = vmul.f32 %v387, 0.35355338
      %v416 = vmul.f32 %v410, 0.35355338
      %v417 = vmul.f32 %v412, 0.35355338
      %v418 = vlaneseq
      %v419 = vshrl.u32 %v418, 7
      %v420 = vadd.s32 %v419, 8
      %vm421 = vcmp.lt.s32.totalorder %v419, 0
      %v422 = vsub.s32 0, %v419
      %v423 = vsel %vm421, %v422, %v419
      %v424 = vshrl.u32 %v423, 3
      %v425 = vand.u32 %v423, 7
      %v426 = vsub.s32 0, %v425
      %v427 = vsel %vm421, %v426, %v425
      %vm428 = vcmp.lt.s32.totalorder %v420, 0
      %v429 = vsub.s32 0, %v420
      %v430 = vsel %vm428, %v429, %v420
      %v431 = vshrl.u32 %v430, 3
      %v432 = vand.u32 %v430, 7
      %v433 = vsub.s32 0, %v432
      %v434 = vsel %vm428, %v433, %v432
      %vm435 = vcmp.ne.s32.totalorder %v427, 0
      %vm436 = vcmp.ne.s32.totalorder %v434, 0
      %vm437 = vcmp.lt.s32.totalorder %v427, 0
      %vm438 = vcmp.lt.s32.totalorder %v434, 0
      %vm439 = vmand %vm437, %vm435
      %vm440 = vmand %vm438, %vm436
      %v441 = vadd.s32 %v427, 8
      %v442 = vadd.s32 %v434, 8
      %v443 = vsel %vm439, %v441, %v427
      %v444 = vsel %vm440, %v442, %v434
      %v445 = vlaneseq
      %v446 = vand.u32 %v445, 127
      %vm447 = vcmp.ge.s32.totalorder %v443, %v446
      %vm448 = vcmp.ge.s32.totalorder %v444, %v446
      %v449 = vsel %vm447, %v414, -1e+30
      %v450 = vsel %vm448, %v415, -1e+30
      %v451 = vsel %vm447, %v416, -1e+30
      %v452 = vsel %vm448, %v417, -1e+30
      %v453 = vsel %vm368, %v449, -inf
      %454 = vmax.xlane.f32.xlu0 %v453
      %v455 = vpop.xlane.xlu0 %454
      %v456 = vsel %vm368, %v450, -inf
      %457 = vmax.xlane.f32.xlu0 %v456
      %v458 = vpop.xlane.xlu0 %457
      %v459 = vsel %vm368, %v451, -inf
      %460 = vmax.xlane.f32.xlu0 %v459
      %v461 = vpop.xlane.xlu0 %460
      %v462 = vsel %vm368, %v452, -inf
      %463 = vmax.xlane.f32.xlu0 %v462
      %v464 = vpop.xlane.xlu0 %463
      %v465 = vsub.f32 %v449, %v455
      %v466 = vsub.f32 %v450, %v458
      %v467 = vsub.f32 %v451, %v461
      %v468 = vsub.f32 %v452, %v464
      %v469 = vmul.f32 %v465, 1.442695
      %v470 = vpow.pop %v469
      %v471 = vmul.f32 %v466, 1.442695
      %v472 = vpow.pop %v471
      %v473 = vmul.f32 %v467, 1.442695
      %v474 = vpow.pop %v473
      %v475 = vmul.f32 %v468, 1.442695
      %v476 = vpow.pop %v475
      %v477 = vsel %vm368, %v470, 0.0
      %478 = vadd.xlane.f32.xlu0 %v477
      %v479 = vpop.xlane.xlu0 %478
      %v480 = vsel %vm368, %v472, 0.0
      %481 = vadd.xlane.f32.xlu0 %v480
      %v482 = vpop.xlane.xlu0 %481
      %v483 = vsel %vm368, %v474, 0.0
      %484 = vadd.xlane.f32.xlu0 %v483
      %v485 = vpop.xlane.xlu0 %484
      %v486 = vsel %vm368, %v476, 0.0
      %487 = vadd.xlane.f32.xlu0 %v486
      %v488 = vpop.xlane.xlu0 %487
      %v489 = vrcp.pop %v479
      %v490 = vrcp.pop %v482
      %v491 = vrcp.pop %v485
      %v492 = vrcp.pop %v488
      %v493 = vmul.f32 %v470, %v489
      %v494 = vmul.f32 %v472, %v490
      %v495 = vmul.f32 %v474, %v491
      %v496 = vmul.f32 %v476, %v492
      %v497 = vpack.c.bf16 %v493, %v493
      %v498 = vpack.c.bf16 %v494, %v494
      %v499 = vpack.c.bf16 %v495, %v495
      %v500 = vpack.c.bf16 %v496, %v496
      %v501 = vpack.c.bf16 %v272, %v272
      %v502 = vpack.c.bf16 %v273, %v273
      %v505 = vunpack.c.l.b16 %v497
      %v506 = vunpack.c.l.b16 %v498
      %v507 = vpack.c.b16 %v506, %v505
      %v509 = vsel %vm368, %v507, 0
      %vm511 = vcmask 1043456
      %v513 = vsel %vm511, %v501, 0
      %515 = vmatpush.bf16.msra.mxu0 0
      %516 = vmatpush.bf16.msra.mxu0 0
      %517 = vmatpush.bf16.msra.mxu0 0
      %518 = vmatpush.bf16.msra.mxu0 0
      %519 = vmatpush.bf16.msra.mxu0 0
      %520 = vmatpush.bf16.msra.mxu0 0
      %521 = vmatpush.bf16.msra.mxu0 0
      %522 = vmatpush.bf16.msra.mxu0 %v513
      %523 = vmatmul.bf16.gmra.mxu0 %v509
      %v524 = vpop.f32.mrf.mxu0
      %v525 = vadd.f32 0.0, %v524
      %v526 = vpop.f32.mrf.mxu0
      %v527 = vadd.f32 0.0, %v526
      %528 = vdwg.mxu0
      %v531 = vunpack.c.l.b16 %v499
      %v532 = vunpack.c.l.b16 %v500
      %v533 = vpack.c.b16 %v532, %v531
      %v535 = vsel %vm368, %v533, 0
      %v538 = vsel %vm511, %v502, 0
      %540 = vmatpush.bf16.msra.mxu0 0
      %541 = vmatpush.bf16.msra.mxu0 0
      %542 = vmatpush.bf16.msra.mxu0 0
      %543 = vmatpush.bf16.msra.mxu0 0
      %544 = vmatpush.bf16.msra.mxu0 0
      %545 = vmatpush.bf16.msra.mxu0 0
      %546 = vmatpush.bf16.msra.mxu0 0
      %547 = vmatpush.bf16.msra.mxu0 %v538
      %548 = vmatmul.bf16.gmra.mxu0 %v535
      %v549 = vpop.f32.mrf.mxu0
      %v550 = vadd.f32 0.0, %v549
      %v551 = vpop.f32.mrf.mxu0
      %v552 = vadd.f32 0.0, %v551
      %553 = vdwg.mxu0
      %554 = vst.msk [vmem:[%s264] sm:$0xff] %vm368, %v525
      %555 = vst.msk [vmem:[%s264 + $0x8] sm:$0xff] %vm368, %v527
      %556 = vst.msk [vmem:[%s264 + $0x10] sm:$0xff] %vm368, %v550
      %557 = vst.msk [vmem:[%s264 + $0x18] sm:$0xff] %vm368, %v552
      %p558 = scmp.lt.s32.totalorder %s16, 1
      %s559 = scalar_select %p558, %s16, 1
      %s560 = smul.addr %s559, 4
      %s561 = smul.addr %s560, 8
      %s562 = scalar_lea.vmem %s5, %s561
      // Predicated region
      $region41: #{midi_forward.8} parent=39 // pred_check
        %p563 = pneg %p154
      $region42: #{midi_forward.8} parent=39 // pred_check_branch
        %565 = sbr.rel (%p563) target = $region44
      $region43: #{midi_forward.8} parent=39 // pred_region
        _
      $region44: #{midi_forward.8} parent=39 // pred_fallthru
        _
    $region40: #{midi_forward.8} parent=5 // pred_fallthru
      _
    %p566 = scmp.le.s32.totalorder 2, %s11
    // Predicated region
    $region45: #{midi_forward.8} parent=5 // pred_check
      %p567 = pneg %p566
    $region46: #{midi_forward.8} parent=5 // pred_check_branch
      %569 = sbr.rel (%p567) target = $region48
    $region47: #{midi_forward.8} parent=5 // pred_region
      %s570 = ssub.s32 %s11, 2
      // Predicated region
      $region49: #{midi_forward.8} parent=47 // pred_check
        %p571 = pneg %p160
      $region50: #{midi_forward.8} parent=47 // pred_check_branch
        %573 = sbr.rel (%p571) target = $region52
      $region51: #{midi_forward.8} parent=47 // pred_region
        %p574 = scmp.lt.s32.totalorder %s17, 1
        %s575 = scalar_select %p574, %s17, 1
        %s576 = smul.addr %s575, 4
        %s577 = smul.addr %s576, 8
        %s578 = scalar_lea.vmem %s5, %s577
      $region52: #{midi_forward.8} parent=47 // pred_fallthru
        _
    $region48: #{midi_forward.8} parent=5 // pred_fallthru
      _
  $region6: #{midi_forward.8} parent=0 // loop_footer
    %s15 = sadd.s32 1, %s11
  $region7: #{midi_forward.8} parent=0 // loop_footer_branch
    %10 = sbr.rel target = $region3
  $region8: #{midi_forward.8} parent=0 // loop_exit
    _

// kernel: midi_forward.13
$region0: #{midi_forward.13}
  #allocation0 [shape = 'u32[]', space=smem, size = 0x4, offset = 0x4, fixed_abs, tag = 'smem constant byte address 0x4 - core index']
  #allocation1 [shape = 'u32[72,128]{1,0:T(1,128)}', space=vmem, size = 0x9000, scoped, tag = 'internal scratch']
  %s0 = inlined_call_operand.vmem [shape: f32[16,32], index: 0, kind: input, shape index: {}]
  %s1 = inlined_call_operand.vmem [shape: bf16[32,64], index: 1, kind: input, shape index: {}]
  %s2 = inlined_call_operand.vmem [shape: f32[1,64], index: 2, kind: input, shape index: {}]
  %s3 = inlined_call_operand.hbm [shape: f32[16,64], index: 3, kind: output, shape index: {}]
  %s4 = sld [smem:[#allocation0]]
  $region22: #{midi_forward.13} parent=0
    _
  %s6 = ssub.s32 1, %s4
  %s7 = scalar_select 0, %s6, %s4
  $region1: #{midi_forward.13} parent=0
    #allocation2 [shape = 'u8[8192]{0}', space=vmem, size = 0x2000, scoped, tag = 'output window, operand 0, single buffered']
    #allocation3 [shape = 's32[1]{0}', space=sflag, size = 0x4, scoped, tag = 'scoped memory for midi_forward.13']
    %8 = vsyncpa [#allocation3], 0
    // Predicated region
    $region2: #{midi_forward.13} parent=1 // pred_check
      _
    $region3: #{midi_forward.13} parent=1 // pred_check_branch
      %10 = sbr.rel (0) target = $region5
    $region4: #{midi_forward.13} parent=1 // pred_region
      _
    $region5: #{midi_forward.13} parent=1 // pred_fallthru
      _
    // Predicated region
    $region6: #{midi_forward.13} parent=1 // pred_check
      _
    $region7: #{midi_forward.13} parent=1 // pred_check_branch
      %12 = sbr.rel (0) target = $region9
    $region8: #{midi_forward.13} parent=1 // pred_region
      _
    $region9: #{midi_forward.13} parent=1 // pred_fallthru
      _
    // Predicated region
    $region10: #{midi_forward.13} parent=1 // pred_check
      _
    $region11: #{midi_forward.13} parent=1 // pred_check_branch
      %14 = sbr.rel (0) target = $region13
    $region12: #{midi_forward.13} parent=1 // pred_region
      _
    $region13: #{midi_forward.13} parent=1 // pred_fallthru
      _
    %v16 = vld [vmem:[%s0] sm:$0xff]
    %v17 = vld [vmem:[%s0 + $0x8] sm:$0xff]
    %v18 = vpack.c.bf16 %v17, %v16
    %v19 = vld [vmem:[%s1] sm:$0xf]
    %v20 = vld [vmem:[%s1 + $0x4] sm:$0xf]
    %v21 = vld [vmem:[%s1 + $0x8] sm:$0xf]
    %v22 = vld [vmem:[%s1 + $0xc] sm:$0xf]
    %v23 = vld [vmem:[%s2] sm:$0x1]
    %v25 = vperm.slane %v23, 0
    %v31 = vunpack.c.l.b16 %v19
    %v32 = vunpack.c.l.b16 %v20
    %v33 = vunpack.c.l.b16 %v21
    %v34 = vunpack.c.l.b16 %v22
    %v35 = vpack.c.b16 %v32, %v31
    %v36 = vpack.c.b16 %v34, %v33
    %vm39 = vcmask 261120
    %v41 = vsel %vm39, %v18, 0
    %43 = vmatpush.bf16.msra.mxu0 0
    %44 = vmatpush.bf16.msra.mxu0 0
    %45 = vmatpush.bf16.msra.mxu0 0
    %46 = vmatpush.bf16.msra.mxu0 0
    %47 = vmatpush.bf16.msra.mxu0 0
    %48 = vmatpush.bf16.msra.mxu0 0
    %49 = vmatpush.bf16.msra.mxu0 %v36
    %50 = vmatpush.bf16.msra.mxu0 %v35
    %51 = vmatmul.bf16.gmra.mxu0 %v41
    %v52 = vpop.f32.mrf.mxu0
    %v53 = vadd.f32 %v25, %v52
    %v54 = vpop.f32.mrf.mxu0
    %v55 = vadd.f32 %v25, %v54
    %56 = vdwg.mxu0
    %vm57 = vcmask 523264
    %58 = vst.msk [vmem:[#allocation2] sm:$0xff] %vm57, %v53
    %59 = vst.msk [vmem:[#allocation2 + $0x8] sm:$0xff] %vm57, %v55
    // Predicated region
    $region14: #{midi_forward.13} parent=1 // pred_check
      _
    $region15: #{midi_forward.13} parent=1 // pred_check_branch
      %61 = sbr.rel (0) target = $region17
    $region16: #{midi_forward.13} parent=1 // pred_region
      %63 = vsyncadd [#allocation3], 0
      %s64 = sshll.u32 [#allocation2], 4
      %s65 = int_to_ptr.vmem [resolvable:$true] %s64
      %s66 = sshll.u32 %s3, 4
      %s67 = int_to_ptr.hbm [resolvable:$true] %s66
      %72 = dma.vmem_to_hbm [thread:$0]  %s65, 256, %s67, [#allocation3], 128, 128, 8
    $region17: #{midi_forward.13} parent=1 // pred_fallthru
      _
    // Predicated region
    $region18: #{midi_forward.13} parent=1 // pred_check
      _
    $region19: #{midi_forward.13} parent=1 // pred_check_branch
      %74 = sbr.rel (0) target = $region21
    $region20: #{midi_forward.13} parent=1 // pred_region
      %76 = dma.done [#allocation3], 256
    $region21: #{midi_forward.13} parent=1 // pred_fallthru
      _
    %77 = vsyncpa [#allocation3], 1

// kernel: midi_forward.9
$region0: #{midi_forward.9}
  #allocation0 [shape = 'u32[]', space=smem, size = 0x4, offset = 0x4, fixed_abs, tag = 'smem constant byte address 0x4 - core index']
  #allocation1 [shape = 'u32[72,128]{1,0:T(1,128)}', space=vmem, size = 0x9000, scoped, tag = 'internal scratch']
  #allocation2 [shape = 'f32[1,1]{1,0:T(1,128)S(1)}', space=vmem, size = 0x200, scoped, tag = 'scoped memory for midi_forward.9']
  %s0 = inlined_call_operand.vmem [shape: f32[16,32], index: 0, kind: input, shape index: {}]
  %s1 = inlined_call_operand.vmem [shape: f32[16,32], index: 1, kind: input, shape index: {}]
  %s2 = inlined_call_operand.vmem [shape: f32[1,32], index: 2, kind: input, shape index: {}]
  %s3 = inlined_call_operand.vmem [shape: f32[1,32], index: 3, kind: input, shape index: {}]
  %s4 = inlined_call_operand.vmem [shape: bf16[32,128], index: 4, kind: input, shape index: {}]
  %s5 = inlined_call_operand.vmem [shape: f32[1,128], index: 5, kind: input, shape index: {}]
  %s6 = inlined_call_operand.vmem [shape: bf16[128,128], index: 6, kind: input, shape index: {}]
  %s7 = inlined_call_operand.vmem [shape: f32[1,128], index: 7, kind: input, shape index: {}]
  %s8 = inlined_call_operand.vmem [shape: bf16[128,128], index: 8, kind: input, shape index: {}]
  %s9 = inlined_call_operand.vmem [shape: f32[1,128], index: 9, kind: input, shape index: {}]
  %s10 = inlined_call_operand.<no memory space> [shape: f32[1,1], index: 10, kind: input, shape index: {}]
  %s11 = inlined_call_operand.vmem [shape: bf16[128,32], index: 11, kind: input, shape index: {}]
  %s12 = inlined_call_operand.vmem [shape: f32[1,32], index: 12, kind: input, shape index: {}]
  %s13 = inlined_call_operand.vmem [shape: f32[16,32], index: 13, kind: output, shape index: {}]
  %s14 = sld [smem:[#allocation0]]
  $region62: #{midi_forward.9} parent=0
    _
  %s16 = ssub.s32 1, %s14
  %s17 = scalar_select 0, %s16, %s14
  %v18 = vstv %s10
  %19 = vst [vmem:[#allocation2] sm:$0x1] %v18
  // Predicated region
  $region2: #{midi_forward.9} parent=0 // pred_check
    _
  $region3: #{midi_forward.9} parent=0 // pred_check_branch
    %21 = sbr.rel (0) target = $region5
  $region4: #{midi_forward.9} parent=0 // pred_region
    _
  $region5: #{midi_forward.9} parent=0 // pred_fallthru
    _
  // Predicated region
  $region6: #{midi_forward.9} parent=0 // pred_check
    _
  $region7: #{midi_forward.9} parent=0 // pred_check_branch
    %23 = sbr.rel (0) target = $region9
  $region8: #{midi_forward.9} parent=0 // pred_region
    _
  $region9: #{midi_forward.9} parent=0 // pred_fallthru
    _
  // Predicated region
  $region10: #{midi_forward.9} parent=0 // pred_check
    _
  $region11: #{midi_forward.9} parent=0 // pred_check_branch
    %25 = sbr.rel (0) target = $region13
  $region12: #{midi_forward.9} parent=0 // pred_region
    _
  $region13: #{midi_forward.9} parent=0 // pred_fallthru
    _
  // Predicated region
  $region14: #{midi_forward.9} parent=0 // pred_check
    _
  $region15: #{midi_forward.9} parent=0 // pred_check_branch
    %27 = sbr.rel (0) target = $region17
  $region16: #{midi_forward.9} parent=0 // pred_region
    _
  $region17: #{midi_forward.9} parent=0 // pred_fallthru
    _
  // Predicated region
  $region18: #{midi_forward.9} parent=0 // pred_check
    _
  $region19: #{midi_forward.9} parent=0 // pred_check_branch
    %29 = sbr.rel (0) target = $region21
  $region20: #{midi_forward.9} parent=0 // pred_region
    _
  $region21: #{midi_forward.9} parent=0 // pred_fallthru
    _
  // Predicated region
  $region22: #{midi_forward.9} parent=0 // pred_check
    _
  $region23: #{midi_forward.9} parent=0 // pred_check_branch
    %31 = sbr.rel (0) target = $region25
  $region24: #{midi_forward.9} parent=0 // pred_region
    _
  $region25: #{midi_forward.9} parent=0 // pred_fallthru
    _
  // Predicated region
  $region26: #{midi_forward.9} parent=0 // pred_check
    _
  $region27: #{midi_forward.9} parent=0 // pred_check_branch
    %33 = sbr.rel (0) target = $region29
  $region28: #{midi_forward.9} parent=0 // pred_region
    _
  $region29: #{midi_forward.9} parent=0 // pred_fallthru
    _
  // Predicated region
  $region30: #{midi_forward.9} parent=0 // pred_check
    _
  $region31: #{midi_forward.9} parent=0 // pred_check_branch
    %35 = sbr.rel (0) target = $region33
  $region32: #{midi_forward.9} parent=0 // pred_region
    _
  $region33: #{midi_forward.9} parent=0 // pred_fallthru
    _
  // Predicated region
  $region34: #{midi_forward.9} parent=0 // pred_check
    _
  $region35: #{midi_forward.9} parent=0 // pred_check_branch
    %37 = sbr.rel (0) target = $region37
  $region36: #{midi_forward.9} parent=0 // pred_region
    _
  $region37: #{midi_forward.9} parent=0 // pred_fallthru
    _
  // Predicated region
  $region38: #{midi_forward.9} parent=0 // pred_check
    _
  $region39: #{midi_forward.9} parent=0 // pred_check_branch
    %39 = sbr.rel (0) target = $region41
  $region40: #{midi_forward.9} parent=0 // pred_region
    _
  $region41: #{midi_forward.9} parent=0 // pred_fallthru
    _
  // Predicated region
  $region42: #{midi_forward.9} parent=0 // pred_check
    _
  $region43: #{midi_forward.9} parent=0 // pred_check_branch
    %41 = sbr.rel (0) target = $region45
  $region44: #{midi_forward.9} parent=0 // pred_region
    _
  $region45: #{midi_forward.9} parent=0 // pred_fallthru
    _
  // Predicated region
  $region46: #{midi_forward.9} parent=0 // pred_check
    _
  $region47: #{midi_forward.9} parent=0 // pred_check_branch
    %43 = sbr.rel (0) target = $region49
  $region48: #{midi_forward.9} parent=0 // pred_region
    _
  $region49: #{midi_forward.9} parent=0 // pred_fallthru
    _
  // Predicated region
  $region50: #{midi_forward.9} parent=0 // pred_check
    _
  $region51: #{midi_forward.9} parent=0 // pred_check_branch
    %45 = sbr.rel (0) target = $region53
  $region52: #{midi_forward.9} parent=0 // pred_region
    _
  $region53: #{midi_forward.9} parent=0 // pred_fallthru
    _
  %v47 = vld [vmem:[%s0] sm:$0xff]
  %v48 = vld [vmem:[%s0 + $0x8] sm:$0xff]
  %v49 = vld [vmem:[%s1] sm:$0xff]
  %v50 = vld [vmem:[%s1 + $0x8] sm:$0xff]
  %v51 = vadd.f32 %v47, %v49
  %v52 = vadd.f32 %v48, %v50
  %v53 = vld [vmem:[%s2] sm:$0x1]
  %v54 = vld [vmem:[%s3] sm:$0x1]
  %vm55 = vcmask 261120
  %v56 = vsel %vm55, %v51, 0.0
  %57 = vadd.xlane.f32.xlu0 %v56
  %v58 = vpop.xlane.xlu0 %57
  %v59 = vsel %vm55, %v52, 0.0
  %60 = vadd.xlane.f32.xlu0 %v59
  %v61 = vpop.xlane.xlu0 %60
  %v62 = vrcp.pop 32.0
  %v63 = vmul.f32 32.0, %v62
  %v64 = vsub.f32 1.0, %v63
  %v65 = vmul.f32 %v62, %v64
  %v66 = vadd.f32 %v62, %v65
  %vm67 = vweird.f32 %v62
  %v68 = vsel %vm67, %v62, %v66
  %v69 = vmul.f32 %v58, %v68
  %v70 = vmul.f32 %v61, %v68
  %v71 = vsub.f32 %v51, %v69
  %v72 = vsub.f32 %v52, %v70
  %v73 = vmul.f32 %v71, %v71
  %v74 = vmul.f32 %v72, %v72
  %v75 = vsel %vm55, %v73, 0.0
  %76 = vadd.xlane.f32.xlu0 %v75
  %v77 = vpop.xlane.xlu0 %76
  %v78 = vsel %vm55, %v74, 0.0
  %79 = vadd.xlane.f32.xlu0 %v78
  %v80 = vpop.xlane.xlu0 %79
  %v81 = vmul.f32 %v77, %v68
  %v82 = vmul.f32 %v80, %v68
  %v83 = vadd.f32 %v81, 1e-05
  %v84 = vadd.f32 %v82, 1e-05
  %v85 = vrsqrt.pop %v83
  %v86 = vmul.f32 %v85, %v83
  %v87 = vmul.f32 %v86, %v85
  %v88 = vmul.f32 0.5, %v87
  %v89 = vsub.f32 1.5, %v88
  %v90 = vmul.f32 %v85, %v89
  %vm91 = vweird.f32 %v83
  %vm92 = vweird.f32 %v85
  %vm93 = vmor %vm91, %vm92
  %v94 = vsel %vm93, %v85, %v90
  %v95 = vrsqrt.pop %v84
  %v96 = vmul.f32 %v95, %v84
  %v97 = vmul.f32 %v96, %v95
  %v98 = vmul.f32 0.5, %v97
  %v99 = vsub.f32 1.5, %v98
  %v100 = vmul.f32 %v95, %v99
  %vm101 = vweird.f32 %v84
  %vm102 = vweird.f32 %v95
  %vm103 = vmor %vm101, %vm102
  %v104 = vsel %vm103, %v95, %v100
  %v105 = vmul.f32 %v71, %v94
  %v106 = vmul.f32 %v72, %v104
  %v108 = vperm.slane %v53, 0
  %v110 = vmul.f32 %v105, %v108
  %v111 = vmul.f32 %v106, %v108
  %v113 = vperm.slane %v54, 0
  %v115 = vadd.f32 %v110, %v113
  %v116 = vadd.f32 %v111, %v113
  %v117 = vpack.c.bf16 %v116, %v115
  %v118 = vld [vmem:[%s4] sm:$0xf]
  %v119 = vld [vmem:[%s4 + $0x4] sm:$0xf]
  %v120 = vld [vmem:[%s4 + $0x8] sm:$0xf]
  %v121 = vld [vmem:[%s4 + $0xc] sm:$0xf]
  %v122 = vld [vmem:[%s5] sm:$0x1]
  %v124 = vperm.slane %v122, 0
  %v130 = vunpack.c.l.b16 %v118
  %v131 = vunpack.c.l.b16 %v119
  %v132 = vunpack.c.l.b16 %v120
  %v133 = vunpack.c.l.b16 %v121
  %v134 = vpack.c.b16 %v131, %v130
  %v135 = vpack.c.b16 %v133, %v132
  %v139 = vsel %vm55, %v117, 0
  %141 = vmatpush.bf16.msra.mxu0 0
  %142 = vmatpush.bf16.msra.mxu0 0
  %143 = vmatpush.bf16.msra.mxu0 0
  %144 = vmatpush.bf16.msra.mxu0 0
  %145 = vmatpush.bf16.msra.mxu0 0
  %146 = vmatpush.bf16.msra.mxu0 0
  %147 = vmatpush.bf16.msra.mxu0 %v135
  %148 = vmatpush.bf16.msra.mxu0 %v134
  %149 = vmatmul.bf16.gmra.mxu0 %v139
  %v150 = vpop.f32.mrf.mxu0
  %v151 = vadd.f32 %v124, %v150
  %v152 = vpop.f32.mrf.mxu0
  %v153 = vadd.f32 %v124, %v152
  %154 = vdwg.mxu0
  %v155 = vpack.c.bf16 %v153, %v151
  %v156 = vld [vmem:[%s6] sm:$0xf]
  %v157 = vld [vmem:[%s6 + $0x4] sm:$0xf]
  %v158 = vld [vmem:[%s6 + $0x8] sm:$0xf]
  %v159 = vld [vmem:[%s6 + $0xc] sm:$0xf]
  %v160 = vld [vmem:[%s6 + $0x10] sm:$0xf]
  %v161 = vld [vmem:[%s6 + $0x14] sm:$0xf]
  %v162 = vld [vmem:[%s6 + $0x18] sm:$0xf]
  %v163 = vld [vmem:[%s6 + $0x1c] sm:$0xf]
  %v164 = vld [vmem:[%s6 + $0x20] sm:$0xf]
  %v165 = vld [vmem:[%s6 + $0x24] sm:$0xf]
  %v166 = vld [vmem:[%s6 + $0x28] sm:$0xf]
  %v167 = vld [vmem:[%s6 + $0x2c] sm:$0xf]
  %v168 = vld [vmem:[%s6 + $0x30] sm:$0xf]
  %v169 = vld [vmem:[%s6 + $0x34] sm:$0xf]
  %v170 = vld [vmem:[%s6 + $0x38] sm:$0xf]
  %v171 = vld [vmem:[%s6 + $0x3c] sm:$0xf]
  %v172 = vld [vmem:[%s7] sm:$0x1]
  %v174 = vperm.slane %v172, 0
  %v192 = vunpack.c.l.b16 %v156
  %v193 = vunpack.c.l.b16 %v157
  %v194 = vunpack.c.l.b16 %v158
  %v195 = vunpack.c.l.b16 %v159
  %v196 = vunpack.c.l.b16 %v160
  %v197 = vunpack.c.l.b16 %v161
  %v198 = vunpack.c.l.b16 %v162
  %v199 = vunpack.c.l.b16 %v163
  %v200 = vunpack.c.l.b16 %v164
  %v201 = vunpack.c.l.b16 %v165
  %v202 = vunpack.c.l.b16 %v166
  %v203 = vunpack.c.l.b16 %v167
  %v204 = vunpack.c.l.b16 %v168
  %v205 = vunpack.c.l.b16 %v169
  %v206 = vunpack.c.l.b16 %v170
  %v207 = vunpack.c.l.b16 %v171
  %v208 = vpack.c.b16 %v193, %v192
  %v209 = vpack.c.b16 %v195, %v194
  %v210 = vpack.c.b16 %v197, %v196
  %v211 = vpack.c.b16 %v199, %v198
  %v212 = vpack.c.b16 %v201, %v200
  %v213 = vpack.c.b16 %v203, %v202
  %v214 = vpack.c.b16 %v205, %v204
  %v215 = vpack.c.b16 %v207, %v206
  %224 = vmatpush.bf16.msra.mxu0 %v215
  %225 = vmatpush.bf16.msra.mxu0 %v214
  %226 = vmatpush.bf16.msra.mxu0 %v213
  %227 = vmatpush.bf16.msra.mxu0 %v212
  %228 = vmatpush.bf16.msra.mxu0 %v211
  %229 = vmatpush.bf16.msra.mxu0 %v210
  %230 = vmatpush.bf16.msra.mxu0 %v209
  %231 = vmatpush.bf16.msra.mxu0 %v208
  %232 = vmatmul.bf16.gmra.mxu0 %v155
  %v233 = vpop.f32.mrf.mxu0
  %v234 = vadd.f32 %v174, %v233
  %v235 = vpop.f32.mrf.mxu0
  %v236 = vadd.f32 %v174, %v235
  %237 = vdwg.mxu0
  %v238 = vld [vmem:[%s8] sm:$0xf]
  %v239 = vld [vmem:[%s8 + $0x4] sm:$0xf]
  %v240 = vld [vmem:[%s8 + $0x8] sm:$0xf]
  %v241 = vld [vmem:[%s8 + $0xc] sm:$0xf]
  %v242 = vld [vmem:[%s8 + $0x10] sm:$0xf]
  %v243 = vld [vmem:[%s8 + $0x14] sm:$0xf]
  %v244 = vld [vmem:[%s8 + $0x18] sm:$0xf]
  %v245 = vld [vmem:[%s8 + $0x1c] sm:$0xf]
  %v246 = vld [vmem:[%s8 + $0x20] sm:$0xf]
  %v247 = vld [vmem:[%s8 + $0x24] sm:$0xf]
  %v248 = vld [vmem:[%s8 + $0x28] sm:$0xf]
  %v249 = vld [vmem:[%s8 + $0x2c] sm:$0xf]
  %v250 = vld [vmem:[%s8 + $0x30] sm:$0xf]
  %v251 = vld [vmem:[%s8 + $0x34] sm:$0xf]
  %v252 = vld [vmem:[%s8 + $0x38] sm:$0xf]
  %v253 = vld [vmem:[%s8 + $0x3c] sm:$0xf]
  %v254 = vld [vmem:[%s9] sm:$0x1]
  %v256 = vperm.slane %v254, 0
  %v274 = vunpack.c.l.b16 %v238
  %v275 = vunpack.c.l.b16 %v239
  %v276 = vunpack.c.l.b16 %v240
  %v277 = vunpack.c.l.b16 %v241
  %v278 = vunpack.c.l.b16 %v242
  %v279 = vunpack.c.l.b16 %v243
  %v280 = vunpack.c.l.b16 %v244
  %v281 = vunpack.c.l.b16 %v245
  %v282 = vunpack.c.l.b16 %v246
  %v283 = vunpack.c.l.b16 %v247
  %v284 = vunpack.c.l.b16 %v248
  %v285 = vunpack.c.l.b16 %v249
  %v286 = vunpack.c.l.b16 %v250
  %v287 = vunpack.c.l.b16 %v251
  %v288 = vunpack.c.l.b16 %v252
  %v289 = vunpack.c.l.b16 %v253
  %v290 = vpack.c.b16 %v275, %v274
  %v291 = vpack.c.b16 %v277, %v276
  %v292 = vpack.c.b16 %v279, %v278
  %v293 = vpack.c.b16 %v281, %v280
  %v294 = vpack.c.b16 %v283, %v282
  %v295 = vpack.c.b16 %v285, %v284
  %v296 = vpack.c.b16 %v287, %v286
  %v297 = vpack.c.b16 %v289, %v288
  %306 = vmatpush.bf16.msra.mxu0 %v297
  %307 = vmatpush.bf16.msra.mxu0 %v296
  %308 = vmatpush.bf16.msra.mxu0 %v295
  %309 = vmatpush.bf16.msra.mxu0 %v294
  %310 = vmatpush.bf16.msra.mxu0 %v293
  %311 = vmatpush.bf16.msra.mxu0 %v292
  %312 = vmatpush.bf16.msra.mxu0 %v291
  %313 = vmatpush.bf16.msra.mxu0 %v290
  %314 = vmatmul.bf16.gmra.mxu0 %v155
  %v315 = vpop.f32.mrf.mxu0
  %v316 = vadd.f32 %v256, %v315
  %v317 = vpop.f32.mrf.mxu0
  %v318 = vadd.f32 %v256, %v317
  %319 = vdwg.mxu0
  %v320 = vld [vmem:[#allocation2] sm:$0x1]
  %s321 = vtos %v320
  %v322 = vstv %s321
  %v323 = vmul.f32 %v322, %v234
  %v324 = vmul.f32 %v322, %v236
  %v325 = vxor.u32 %v323, 2147483648
  %v326 = vxor.u32 %v324, 2147483648
  %v327 = vmul.f32 %v325, 1.442695
  %v328 = vpow.pop %v327
  %v329 = vmul.f32 %v326, 1.442695
  %v330 = vpow.pop %v329
  %v331 = vadd.f32 %v328, 1.0
  %v332 = vadd.f32 %v330, 1.0
  %v333 = vrcp.pop %v331
  %v334 = vmul.f32 %v331, %v333
  %v335 = vsub.f32 1.0, %v334
  %v336 = vmul.f32 %v333, %v335
  %v337 = vadd.f32 %v333, %v336
  %vm338 = vweird.f32 %v331
  %vm339 = vweird.f32 %v333
  %vm340 = vmor %vm338, %vm339
  %v341 = vsel %vm340, %v333, %v337
  %v342 = vand.u32 2147483647, %v331
  %vm343 = vcmp.eq.f32.partialorder %v342, 8.507059e+37
  %v344 = vand.u32 %v331, 2147483648
  %v345 = vor.u32 1.1754944e-38, %v344
  %v346 = vsel %vm343, %v345, %v341
  %v347 = vmul.f32 1.0, %v346
  %v348 = vrcp.pop %v332
  %v349 = vmul.f32 %v332, %v348
  %v350 = vsub.f32 1.0, %v349
  %v351 = vmul.f32 %v348, %v350
  %v352 = vadd.f32 %v348, %v351
  %vm353 = vweird.f32 %v332
  %vm354 = vweird.f32 %v348
  %vm355 = vmor %vm353, %vm354
  %v356 = vsel %vm355, %v348, %v352
  %v357 = vand.u32 2147483647, %v332
  %vm358 = vcmp.eq.f32.partialorder %v357, 8.507059e+37
  %v359 = vand.u32 %v332, 2147483648
  %v360 = vor.u32 1.1754944e-38, %v359
  %v361 = vsel %vm358, %v360, %v356
  %v362 = vmul.f32 1.0, %v361
  %v363 = vmul.f32 %v234, %v347
  %v364 = vmul.f32 %v236, %v362
  %v365 = vmul.f32 %v363, %v316
  %v366 = vmul.f32 %v364, %v318
  %v367 = vpack.c.bf16 %v366, %v365
  %v368 = vld [vmem:[%s11] sm:$0xf]
  %v369 = vld [vmem:[%s11 + $0x4] sm:$0xf]
  %v370 = vld [vmem:[%s11 + $0x8] sm:$0xf]
  %v371 = vld [vmem:[%s11 + $0xc] sm:$0xf]
  %v372 = vld [vmem:[%s11 + $0x10] sm:$0xf]
  %v373 = vld [vmem:[%s11 + $0x14] sm:$0xf]
  %v374 = vld [vmem:[%s11 + $0x18] sm:$0xf]
  %v375 = vld [vmem:[%s11 + $0x1c] sm:$0xf]
  %v376 = vld [vmem:[%s11 + $0x20] sm:$0xf]
  %v377 = vld [vmem:[%s11 + $0x24] sm:$0xf]
  %v378 = vld [vmem:[%s11 + $0x28] sm:$0xf]
  %v379 = vld [vmem:[%s11 + $0x2c] sm:$0xf]
  %v380 = vld [vmem:[%s11 + $0x30] sm:$0xf]
  %v381 = vld [vmem:[%s11 + $0x34] sm:$0xf]
  %v382 = vld [vmem:[%s11 + $0x38] sm:$0xf]
  %v383 = vld [vmem:[%s11 + $0x3c] sm:$0xf]
  %v384 = vld [vmem:[%s12] sm:$0x1]
  %v386 = vperm.slane %v384, 0
  %v404 = vunpack.c.l.b16 %v368
  %v405 = vunpack.c.l.b16 %v369
  %v406 = vunpack.c.l.b16 %v370
  %v407 = vunpack.c.l.b16 %v371
  %v408 = vunpack.c.l.b16 %v372
  %v409 = vunpack.c.l.b16 %v373
  %v410 = vunpack.c.l.b16 %v374
  %v411 = vunpack.c.l.b16 %v375
  %v412 = vunpack.c.l.b16 %v376
  %v413 = vunpack.c.l.b16 %v377
  %v414 = vunpack.c.l.b16 %v378
  %v415 = vunpack.c.l.b16 %v379
  %v416 = vunpack.c.l.b16 %v380
  %v417 = vunpack.c.l.b16 %v381
  %v418 = vunpack.c.l.b16 %v382
  %v419 = vunpack.c.l.b16 %v383
  %v420 = vpack.c.b16 %v405, %v404
  %v421 = vpack.c.b16 %v407, %v406
  %v422 = vpack.c.b16 %v409, %v408
  %v423 = vpack.c.b16 %v411, %v410
  %v424 = vpack.c.b16 %v413, %v412
  %v425 = vpack.c.b16 %v415, %v414
  %v426 = vpack.c.b16 %v417, %v416
  %v427 = vpack.c.b16 %v419, %v418
  %436 = vmatpush.bf16.msra.mxu0 %v427
  %437 = vmatpush.bf16.msra.mxu0 %v426
  %438 = vmatpush.bf16.msra.mxu0 %v425
  %439 = vmatpush.bf16.msra.mxu0 %v424
  %440 = vmatpush.bf16.msra.mxu0 %v423
  %441 = vmatpush.bf16.msra.mxu0 %v422
  %442 = vmatpush.bf16.msra.mxu0 %v421
  %443 = vmatpush.bf16.msra.mxu0 %v420
  %444 = vmatmul.bf16.gmra.mxu0 %v367
  %v445 = vpop.f32.mrf.mxu0
  %v446 = vadd.f32 %v386, %v445
  %v447 = vpop.f32.mrf.mxu0
  %v448 = vadd.f32 %v386, %v447
  %449 = vdwg.mxu0
  %v450 = vadd.f32 %v51, %v446
  %v451 = vadd.f32 %v52, %v448
  %452 = vst.msk [vmem:[%s13] sm:$0xff] %vm55, %v450
  %453 = vst.msk [vmem:[%s13 + $0x8] sm:$0xff] %vm55, %v451
  // Predicated region
  $region54: #{midi_forward.9} parent=0 // pred_check
    _
  $region55: #{midi_forward.9} parent=0 // pred_check_branch
    %455 = sbr.rel (0) target = $region57
  $region56: #{midi_forward.9} parent=0 // pred_region
    _
  $region57: #{midi_forward.9} parent=0 // pred_fallthru
    _
  // Predicated region
  $region58: #{midi_forward.9} parent=0 // pred_check
    _
  $region59: #{midi_forward.9} parent=0 // pred_check_branch
    %457 = sbr.rel (0) target = $region61
  $region60: #{midi_forward.9} parent=0 // pred_region
    _
  $region61: #{midi_forward.9} parent=0 // pred_fallthru
    _

</llo_original>
